<compile_context>
chip_gen: v7x
topology: tpu7x:2x2x1
jax: 0.10.0
libtpu: 0.0.40
codegen_flags: <defaults>
</compile_context>

<pallas_src>
import jax
import jax.numpy as jnp
from jax.experimental import pallas as pl
from jax.experimental.pallas import tpu as pltpu

LANE = 128
SUBLANE = 8


def _round_up(x, m):
    return ((x + m - 1) // m) * m


def _cdiv(a, b):
    return -(-a // b)


def _pad2(a, rows, cols):
    r, c = a.shape
    return jnp.pad(a, ((0, rows - r), (0, cols - c)))


# ---------------------------------------------------------------------------
# Kernel
# ---------------------------------------------------------------------------
def _pairwise_mlp_kernel(pos_ref, neg_ref, w1_ref, b1_ref, w2_ref, b2_ref,
                         w3_ref, b3_ref, w4_ref, b4_ref,
                         pos_out_ref, neg_out_ref):
    """One (tile, H) block of pos rows and one of neg rows through the MLP."""
    w4 = w4_ref[...]            # (1, n2) f32 row vector, zero-padded lanes
    b4 = b4_ref[...]            # (1, 1)  f32

    def branch(x_ref, out_ref):
        x = x_ref[...]                                          # (tb, H) f32
        # Three MXU matmuls with bf16 operands, f32 accumulation.
        h = jnp.dot(x.astype(jnp.bfloat16), w1_ref[...],
                    preferred_element_type=jnp.float32)
        h = jnp.maximum(h + b1_ref[...], 0.0)
        h = jnp.dot(h.astype(jnp.bfloat16), w2_ref[...],
                    preferred_element_type=jnp.float32)
        h = jnp.maximum(h + b2_ref[...], 0.0)
        h = jnp.dot(h.astype(jnp.bfloat16), w3_ref[...],
                    preferred_element_type=jnp.float32)
        h = jnp.maximum(h + b3_ref[...], 0.0)                   # (tb, n2) f32

        # fc4 (out_features == 1): contract w4 against the *transposed*
        # activations (same rhs-transposed dot pattern as q @ k.T in flash
        # attention) so the result is a lane-dense (1, tb) row -> unmasked
        # full-vreg stores instead of a (tb, 1) column of masked stores.
        # Padded lanes of w4 are zero, so the contraction is exact.
        logits = jax.lax.dot_general(
            w4, h, dimension_numbers=(((1,), (1,)), ((), ())),
            preferred_element_type=jnp.float32) + b4            # (1, tb)

        # Numerically stable sigmoid, f32 elementwise (EUP exp).
        e = jnp.exp(-jnp.abs(logits))
        out_ref[...] = jnp.where(logits >= 0.0,
                                 1.0 / (1.0 + e), e / (1.0 + e))

    # Shared weights, one traced body, two branches back-to-back in VMEM.
    branch(pos_ref, pos_out_ref)
    branch(neg_ref, neg_out_ref)


# ---------------------------------------------------------------------------
# One-time parameter preparation (hoisted out of the per-step call)
# ---------------------------------------------------------------------------
def prepare_params(params):
    """Pad weights to 128-lane widths and cast matmul weights to bf16 ONCE.

    Weights are stored (in_features, out_features); biases are (1, out).
    Zero padding keeps the math exact (padded activation columns are exactly
    zero through ReLU; padded w4 lanes are zero for the final contraction).
    """
    H = params["w1"].shape[0]
    n1 = _round_up(2 * H, LANE)   # fc1 output width (padded)
    n2 = _round_up(H, LANE)       # fc2/fc3 output width (padded)
    return {
        "hidden": H, "n1": n1, "n2": n2,
        "w1": _pad2(params["w1"], H, n1).astype(jnp.bfloat16),
        "b1": _pad2(params["b1"], 1, n1).astype(jnp.float32),
        "w2": _pad2(params["w2"], n1, n2).astype(jnp.bfloat16),
        "b2": _pad2(params["b2"], 1, n2).astype(jnp.float32),
        "w3": _pad2(params["w3"], n2, n2).astype(jnp.bfloat16),
        "b3": _pad2(params["b3"], 1, n2).astype(jnp.float32),
        "w4": _pad2(params["w4"].T, 1, n2).astype(jnp.float32),   # (1, n2) row
        "b4": params["b4"].reshape(1, 1).astype(jnp.float32),
    }


# ---------------------------------------------------------------------------
# Tiling / VMEM budgeting
# ---------------------------------------------------------------------------
def _vmem_capacity_bytes():
    try:
        return int(pltpu.get_tpu_info().vmem_capacity_bytes)
    except Exception:
        return 64 * 1024 * 1024      # conservative default (v7x per-TC)


def _choose_tile(batch_rows, H, n1, n2, vmem_budget):
    """Pick a per-branch batch tile that fits the VMEM budget.

    Conservative model (worst case: weights double-buffered if the
    single-buffer hint is ignored):
      fixed   = bf16 weights (x2 buffers) + f32 biases (x2 buffers)
      per_row = dbl-buffered f32 inputs for both branches + f32/bf16
                intermediates per branch-row.
    """
    fixed = 4 * (H * n1 + n1 * n2 + n2 * n2) + 8 * 4 * (n1 + 3 * n2 + 1)
    per_row = 28 * H + 12 * n1 + 32 * n2 + 64
    avail = max(vmem_budget - fixed, per_row * SUBLANE)
    tb_cap = max(SUBLANE, min(1024, avail // per_row))
    if tb_cap >= LANE:
        tb_cap = (tb_cap // LANE) * LANE

    b_min = _round_up(batch_rows, SUBLANE)
    n_tiles = _cdiv(b_min, tb_cap)
    # v7x has 2 TensorCores: give the 'parallel' batch axis >= 2 balanced
    # steps when there is enough work to split.
    if n_tiles == 1 and b_min >= 256:
        n_tiles = 2
    tb = _cdiv(b_min, n_tiles)
    # If there is more than one tile, the (1, tb) output block's lane dim must
    # be a multiple of 128; otherwise a sublane multiple suffices.
    align = LANE if (n_tiles > 1 or tb >= LANE) else SUBLANE
    tb = _round_up(tb, align)
    n_tiles = _cdiv(b_min, tb)
    return tb, n_tiles


# ---------------------------------------------------------------------------
# Forward wrapper
# ---------------------------------------------------------------------------
def pairwise_network_forward(pos_features, neg_features, prepared):
    """prepared: output of prepare_params(). Returns (pos_out, neg_out), each (B, 1)."""
    B, H = pos_features.shape
    assert prepared["hidden"] == H
    n1, n2 = prepared["n1"], prepared["n2"]

    cap = _vmem_capacity_bytes()
    vmem_limit = min((cap * 3) // 4, 100 * 1024 * 1024)
    tb, n_tiles = _choose_tile(B, H, n1, n2, int(vmem_limit * 0.8))
    b_pad = tb * n_tiles

    pos = pos_features.astype(jnp.float32)
    neg = neg_features.astype(jnp.float32)
    if b_pad != B:
        pos = jnp.pad(pos, ((0, b_pad - B), (0, 0)))
        neg = jnp.pad(neg, ((0, b_pad - B), (0, 0)))

    def _run(single_buffer_weights):
        def w_spec(arr):
            # Constant index_map -> VMEM-resident; single buffer avoids wasting
            # a second pipeline buffer on never-changing blocks.
            if single_buffer_weights:
                return pl.BlockSpec(arr.shape, lambda i: (0, 0),
                                    pipeline_mode=pl.Buffered(1))
            return pl.BlockSpec(arr.shape, lambda i: (0, 0))

        grid_spec = pltpu.PrefetchScalarGridSpec(
            num_scalar_prefetch=0,
            grid=(n_tiles,),
            in_specs=[
                pl.BlockSpec((tb, H), lambda i: (i, 0)),     # streamed pos rows
                pl.BlockSpec((tb, H), lambda i: (i, 0)),     # streamed neg rows
                w_spec(prepared["w1"]), w_spec(prepared["b1"]),
                w_spec(prepared["w2"]), w_spec(prepared["b2"]),
                w_spec(prepared["w3"]), w_spec(prepared["b3"]),
                w_spec(prepared["w4"]), w_spec(prepared["b4"]),
            ],
            out_specs=(
                pl.BlockSpec((1, tb), lambda i: (0, i)),     # lane-dense pos out
                pl.BlockSpec((1, tb), lambda i: (0, i)),     # lane-dense neg out
            ),
        )
        return pl.pallas_call(
            _pairwise_mlp_kernel,
            out_shape=(jax.ShapeDtypeStruct((1, b_pad), jnp.float32),
                       jax.ShapeDtypeStruct((1, b_pad), jnp.float32)),
            grid_spec=grid_spec,
            compiler_params=pltpu.CompilerParams(
                dimension_semantics=("parallel",),
                vmem_limit_bytes=int(vmem_limit),
            ),
        )(pos, neg,
          prepared["w1"], prepared["b1"], prepared["w2"], prepared["b2"],
          prepared["w3"], prepared["b3"], prepared["w4"], prepared["b4"])

    try:
        pos_out, neg_out = _run(True)
    except Exception:
        # pipeline_mode=pl.Buffered(1) not accepted by this jax version; fall
        # back to default (double-buffered) resident weights.
        pos_out, neg_out = _run(False)

    pos_out = pos_out.reshape(-1)[:B].reshape(B, 1)
    neg_out = neg_out.reshape(-1)[:B].reshape(B, 1)
    return pos_out, neg_out


# ---------------------------------------------------------------------------
# Synthetic params + pure-JAX reference
# ---------------------------------------------------------------------------
def init_params(key, hidden_size):
    """Deterministic synthetic parameters matching nn.Linear shapes
    (stored transposed: (in_features, out_features))."""
    ks = jax.random.split(key, 8)

    def lin(kw, kb, fan_in, fan_out):
        bound = 1.0 / jnp.sqrt(fan_in)
        w = jax.random.uniform(kw, (fan_in, fan_out), jnp.float32, -bound, bound)
        b = jax.random.uniform(kb, (1, fan_out), jnp.float32, -bound, bound)
        return w, b

    w1, b1 = lin(ks[0], ks[1], hidden_size, 2 * hidden_size)
    w2, b2 = lin(ks[2], ks[3], 2 * hidden_size, hidden_size)
    w3, b3 = lin(ks[4], ks[5], hidden_size, hidden_size)
    w4, b4 = lin(ks[6], ks[7], hidden_size, 1)
    return dict(w1=w1, b1=b1, w2=w2, b2=b2, w3=w3, b3=b3, w4=w4, b4=b4)


def reference_forward(pos, neg, p):
    def mlp(x):
        h = jax.nn.relu(x @ p["w1"] + p["b1"])
        h = jax.nn.relu(h @ p["w2"] + p["b2"])
        h = jax.nn.relu(h @ p["w3"] + p["b3"])
        return jax.nn.sigmoid(h @ p["w4"] + p["b4"])
    return mlp(pos), mlp(neg)


if __name__ == "__main__":
    key = jax.random.PRNGKey(0)
    k_params, k_pos, k_neg = jax.random.split(key, 3)

    batch = 8
    hidden = 32

    raw_params = init_params(k_params, hidden)
    params = prepare_params(raw_params)   # pad/cast once, outside the step

    pos_features = jax.random.normal(k_pos, (batch, hidden), jnp.float32)
    neg_features = jax.random.normal(k_neg, (batch, hidden), jnp.float32)

    pos_out, neg_out = pairwise_network_forward(pos_features, neg_features, params)
    jax.block_until_ready((pos_out, neg_out))

    # sanity check against pure-JAX f32 reference (bf16 MXU operands ->
    # tolerance loosened vs. the exact-f32 1e-5 check).
    ref_pos, ref_neg = reference_forward(pos_features, neg_features, raw_params)
    assert pos_out.shape == (batch, 1) and neg_out.shape == (batch, 1)
    assert jnp.allclose(pos_out, ref_pos, atol=3e-2, rtol=3e-2)
    assert jnp.allclose(neg_out, ref_neg, atol=3e-2, rtol=3e-2)

    print("KERNEL_OK")
</pallas_src>

<mosaic_0001>
module attributes {stable_mosaic.version = 11 : i64} {
  func.func @_pairwise_mlp_kernel(%arg0: i32, %arg1: memref<8x32xf32, #tpu.memory_space<vmem>>, %arg2: memref<8x32xf32, #tpu.memory_space<vmem>>, %arg3: memref<32x128xbf16, #tpu.memory_space<vmem>>, %arg4: memref<1x128xf32, #tpu.memory_space<vmem>>, %arg5: memref<128x128xbf16, #tpu.memory_space<vmem>>, %arg6: memref<1x128xf32, #tpu.memory_space<vmem>>, %arg7: memref<128x128xbf16, #tpu.memory_space<vmem>>, %arg8: memref<1x128xf32, #tpu.memory_space<vmem>>, %arg9: memref<1x128xf32, #tpu.memory_space<vmem>>, %arg10: memref<1x1xf32, #tpu.memory_space<vmem>>, %arg11: memref<1x8xf32, #tpu.memory_space<vmem>>, %arg12: memref<1x8xf32, #tpu.memory_space<vmem>>) attributes {dimension_semantics = [#tpu.dimension_semantics<parallel>], iteration_bounds = array<i64: 1>, scalar_prefetch = 0 : i64, scratch_operands = 0 : i64, tpu.core_type = #tpu.core_type<tc>, window_params = [{transform_indices = @transform_0, window_bounds = array<i64: 8, 32>}, {transform_indices = @transform_1, window_bounds = array<i64: 8, 32>}, {pipeline_mode = #tpu.pipeline_mode<synchronous>, transform_indices = @transform_2, window_bounds = array<i64: 32, 128>}, {pipeline_mode = #tpu.pipeline_mode<synchronous>, transform_indices = @transform_3, window_bounds = array<i64: 1, 128>}, {pipeline_mode = #tpu.pipeline_mode<synchronous>, transform_indices = @transform_4, window_bounds = array<i64: 128, 128>}, {pipeline_mode = #tpu.pipeline_mode<synchronous>, transform_indices = @transform_5, window_bounds = array<i64: 1, 128>}, {pipeline_mode = #tpu.pipeline_mode<synchronous>, transform_indices = @transform_6, window_bounds = array<i64: 128, 128>}, {pipeline_mode = #tpu.pipeline_mode<synchronous>, transform_indices = @transform_7, window_bounds = array<i64: 1, 128>}, {pipeline_mode = #tpu.pipeline_mode<synchronous>, transform_indices = @transform_8, window_bounds = array<i64: 1, 128>}, {pipeline_mode = #tpu.pipeline_mode<synchronous>, transform_indices = @transform_9, window_bounds = array<i64: 1, 1>}, {transform_indices = @transform_10, window_bounds = array<i64: 1, 8>}, {transform_indices = @transform_11, window_bounds = array<i64: 1, 8>}]} {
    %c0 = arith.constant 0 : index
    %c0_0 = arith.constant 0 : index
    %0 = vector.load %arg9[%c0, %c0_0] : memref<1x128xf32, #tpu.memory_space<vmem>>, vector<1x128xf32>
    %c0_1 = arith.constant 0 : index
    %c0_2 = arith.constant 0 : index
    %1 = vector.load %arg10[%c0_1, %c0_2] : memref<1x1xf32, #tpu.memory_space<vmem>>, vector<1x1xf32>
    %c0_3 = arith.constant 0 : index
    %c0_4 = arith.constant 0 : index
    %2 = vector.load %arg1[%c0_3, %c0_4] : memref<8x32xf32, #tpu.memory_space<vmem>>, vector<8x32xf32>
    %3 = arith.truncf %2 : vector<8x32xf32> to vector<8x32xbf16>
    %c0_5 = arith.constant 0 : index
    %c0_6 = arith.constant 0 : index
    %4 = vector.load %arg3[%c0_5, %c0_6] : memref<32x128xbf16, #tpu.memory_space<vmem>>, vector<32x128xbf16>
    %cst = arith.constant dense<0.000000e+00> : vector<8x128xf32>
    %5 = tpu.matmul %3, %4, %cst {dimension_numbers = #tpu.dot_dimension_numbers<[1], [0], [0], [1], [0, 0, 1, 1], [], []>} : vector<8x32xbf16>, vector<32x128xbf16>, vector<8x128xf32> -> vector<8x128xf32>
    %c0_7 = arith.constant 0 : index
    %c0_8 = arith.constant 0 : index
    %6 = vector.load %arg4[%c0_7, %c0_8] : memref<1x128xf32, #tpu.memory_space<vmem>>, vector<1x128xf32>
    %7 = vector.broadcast %6 : vector<1x128xf32> to vector<8x128xf32>
    %8 = arith.addf %5, %7 : vector<8x128xf32>
    %cst_9 = arith.constant 0.000000e+00 : f32
    %9 = vector.broadcast %cst_9 : f32 to vector<8x128xf32>
    %10 = arith.maximumf %8, %9 : vector<8x128xf32>
    %11 = arith.truncf %10 : vector<8x128xf32> to vector<8x128xbf16>
    %c0_10 = arith.constant 0 : index
    %c0_11 = arith.constant 0 : index
    %12 = vector.load %arg5[%c0_10, %c0_11] : memref<128x128xbf16, #tpu.memory_space<vmem>>, vector<128x128xbf16>
    %cst_12 = arith.constant dense<0.000000e+00> : vector<8x128xf32>
    %13 = tpu.matmul %11, %12, %cst_12 {dimension_numbers = #tpu.dot_dimension_numbers<[1], [0], [0], [1], [0, 0, 1, 1], [], []>} : vector<8x128xbf16>, vector<128x128xbf16>, vector<8x128xf32> -> vector<8x128xf32>
    %c0_13 = arith.constant 0 : index
    %c0_14 = arith.constant 0 : index
    %14 = vector.load %arg6[%c0_13, %c0_14] : memref<1x128xf32, #tpu.memory_space<vmem>>, vector<1x128xf32>
    %15 = vector.broadcast %14 : vector<1x128xf32> to vector<8x128xf32>
    %16 = arith.addf %13, %15 : vector<8x128xf32>
    %cst_15 = arith.constant 0.000000e+00 : f32
    %17 = vector.broadcast %cst_15 : f32 to vector<8x128xf32>
    %18 = arith.maximumf %16, %17 : vector<8x128xf32>
    %19 = arith.truncf %18 : vector<8x128xf32> to vector<8x128xbf16>
    %c0_16 = arith.constant 0 : index
    %c0_17 = arith.constant 0 : index
    %20 = vector.load %arg7[%c0_16, %c0_17] : memref<128x128xbf16, #tpu.memory_space<vmem>>, vector<128x128xbf16>
    %cst_18 = arith.constant dense<0.000000e+00> : vector<8x128xf32>
    %21 = tpu.matmul %19, %20, %cst_18 {dimension_numbers = #tpu.dot_dimension_numbers<[1], [0], [0], [1], [0, 0, 1, 1], [], []>} : vector<8x128xbf16>, vector<128x128xbf16>, vector<8x128xf32> -> vector<8x128xf32>
    %c0_19 = arith.constant 0 : index
    %c0_20 = arith.constant 0 : index
    %22 = vector.load %arg8[%c0_19, %c0_20] : memref<1x128xf32, #tpu.memory_space<vmem>>, vector<1x128xf32>
    %23 = vector.broadcast %22 : vector<1x128xf32> to vector<8x128xf32>
    %24 = arith.addf %21, %23 : vector<8x128xf32>
    %cst_21 = arith.constant 0.000000e+00 : f32
    %25 = vector.broadcast %cst_21 : f32 to vector<8x128xf32>
    %26 = arith.maximumf %24, %25 : vector<8x128xf32>
    %cst_22 = arith.constant dense<0.000000e+00> : vector<1x8xf32>
    %27 = tpu.matmul %0, %26, %cst_22 {dimension_numbers = #tpu.dot_dimension_numbers<[1], [1], [0], [0], [0, 0, 1, 0], [], []>} : vector<1x128xf32>, vector<8x128xf32>, vector<1x8xf32> -> vector<1x8xf32>
    %28 = vector.broadcast %1 : vector<1x1xf32> to vector<1x8xf32>
    %29 = arith.addf %27, %28 : vector<1x8xf32>
    %30 = math.absf %29 : vector<1x8xf32>
    %cst_23 = arith.constant 0.000000e+00 : f32
    %31 = vector.broadcast %cst_23 : f32 to vector<1x8xf32>
    %32 = arith.subf %31, %30 : vector<1x8xf32>
    %33 = math.exp %32 : vector<1x8xf32>
    %cst_24 = arith.constant 0.000000e+00 : f32
    %34 = vector.broadcast %cst_24 : f32 to vector<1x8xf32>
    %35 = arith.cmpf oge, %29, %34 : vector<1x8xf32>
    %cst_25 = arith.constant 1.000000e+00 : f32
    %36 = vector.broadcast %cst_25 : f32 to vector<1x8xf32>
    %37 = arith.addf %36, %33 : vector<1x8xf32>
    %cst_26 = arith.constant 1.000000e+00 : f32
    %38 = vector.broadcast %cst_26 : f32 to vector<1x8xf32>
    %39 = arith.divf %38, %37 : vector<1x8xf32>
    %cst_27 = arith.constant 1.000000e+00 : f32
    %40 = vector.broadcast %cst_27 : f32 to vector<1x8xf32>
    %41 = arith.addf %40, %33 : vector<1x8xf32>
    %42 = arith.divf %33, %41 : vector<1x8xf32>
    %43 = arith.select %35, %39, %42 : vector<1x8xi1>, vector<1x8xf32>
    %c0_28 = arith.constant 0 : index
    %c0_29 = arith.constant 0 : index
    %44 = vector.load %arg11[%c0_28, %c0_29] : memref<1x8xf32, #tpu.memory_space<vmem>>, vector<1x8xf32>
    tpu.vector_store %arg11[%c0_28, %c0_29], %43 {strides = array<i32>} : memref<1x8xf32, #tpu.memory_space<vmem>>, vector<1x8xf32>,
    %c0_30 = arith.constant 0 : index
    %c0_31 = arith.constant 0 : index
    %45 = vector.load %arg2[%c0_30, %c0_31] : memref<8x32xf32, #tpu.memory_space<vmem>>, vector<8x32xf32>
    %46 = arith.truncf %45 : vector<8x32xf32> to vector<8x32xbf16>
    %c0_32 = arith.constant 0 : index
    %c0_33 = arith.constant 0 : index
    %47 = vector.load %arg3[%c0_32, %c0_33] : memref<32x128xbf16, #tpu.memory_space<vmem>>, vector<32x128xbf16>
    %cst_34 = arith.constant dense<0.000000e+00> : vector<8x128xf32>
    %48 = tpu.matmul %46, %47, %cst_34 {dimension_numbers = #tpu.dot_dimension_numbers<[1], [0], [0], [1], [0, 0, 1, 1], [], []>} : vector<8x32xbf16>, vector<32x128xbf16>, vector<8x128xf32> -> vector<8x128xf32>
    %c0_35 = arith.constant 0 : index
    %c0_36 = arith.constant 0 : index
    %49 = vector.load %arg4[%c0_35, %c0_36] : memref<1x128xf32, #tpu.memory_space<vmem>>, vector<1x128xf32>
    %50 = vector.broadcast %49 : vector<1x128xf32> to vector<8x128xf32>
    %51 = arith.addf %48, %50 : vector<8x128xf32>
    %cst_37 = arith.constant 0.000000e+00 : f32
    %52 = vector.broadcast %cst_37 : f32 to vector<8x128xf32>
    %53 = arith.maximumf %51, %52 : vector<8x128xf32>
    %54 = arith.truncf %53 : vector<8x128xf32> to vector<8x128xbf16>
    %c0_38 = arith.constant 0 : index
    %c0_39 = arith.constant 0 : index
    %55 = vector.load %arg5[%c0_38, %c0_39] : memref<128x128xbf16, #tpu.memory_space<vmem>>, vector<128x128xbf16>
    %cst_40 = arith.constant dense<0.000000e+00> : vector<8x128xf32>
    %56 = tpu.matmul %54, %55, %cst_40 {dimension_numbers = #tpu.dot_dimension_numbers<[1], [0], [0], [1], [0, 0, 1, 1], [], []>} : vector<8x128xbf16>, vector<128x128xbf16>, vector<8x128xf32> -> vector<8x128xf32>
    %c0_41 = arith.constant 0 : index
    %c0_42 = arith.constant 0 : index
    %57 = vector.load %arg6[%c0_41, %c0_42] : memref<1x128xf32, #tpu.memory_space<vmem>>, vector<1x128xf32>
    %58 = vector.broadcast %57 : vector<1x128xf32> to vector<8x128xf32>
    %59 = arith.addf %56, %58 : vector<8x128xf32>
    %cst_43 = arith.constant 0.000000e+00 : f32
    %60 = vector.broadcast %cst_43 : f32 to vector<8x128xf32>
    %61 = arith.maximumf %59, %60 : vector<8x128xf32>
    %62 = arith.truncf %61 : vector<8x128xf32> to vector<8x128xbf16>
    %c0_44 = arith.constant 0 : index
    %c0_45 = arith.constant 0 : index
    %63 = vector.load %arg7[%c0_44, %c0_45] : memref<128x128xbf16, #tpu.memory_space<vmem>>, vector<128x128xbf16>
    %cst_46 = arith.constant dense<0.000000e+00> : vector<8x128xf32>
    %64 = tpu.matmul %62, %63, %cst_46 {dimension_numbers = #tpu.dot_dimension_numbers<[1], [0], [0], [1], [0, 0, 1, 1], [], []>} : vector<8x128xbf16>, vector<128x128xbf16>, vector<8x128xf32> -> vector<8x128xf32>
    %c0_47 = arith.constant 0 : index
    %c0_48 = arith.constant 0 : index
    %65 = vector.load %arg8[%c0_47, %c0_48] : memref<1x128xf32, #tpu.memory_space<vmem>>, vector<1x128xf32>
    %66 = vector.broadcast %65 : vector<1x128xf32> to vector<8x128xf32>
    %67 = arith.addf %64, %66 : vector<8x128xf32>
    %cst_49 = arith.constant 0.000000e+00 : f32
    %68 = vector.broadcast %cst_49 : f32 to vector<8x128xf32>
    %69 = arith.maximumf %67, %68 : vector<8x128xf32>
    %cst_50 = arith.constant dense<0.000000e+00> : vector<1x8xf32>
    %70 = tpu.matmul %0, %69, %cst_50 {dimension_numbers = #tpu.dot_dimension_numbers<[1], [1], [0], [0], [0, 0, 1, 0], [], []>} : vector<1x128xf32>, vector<8x128xf32>, vector<1x8xf32> -> vector<1x8xf32>
    %71 = vector.broadcast %1 : vector<1x1xf32> to vector<1x8xf32>
    %72 = arith.addf %70, %71 : vector<1x8xf32>
    %73 = math.absf %72 : vector<1x8xf32>
    %cst_51 = arith.constant 0.000000e+00 : f32
    %74 = vector.broadcast %cst_51 : f32 to vector<1x8xf32>
    %75 = arith.subf %74, %73 : vector<1x8xf32>
    %76 = math.exp %75 : vector<1x8xf32>
    %cst_52 = arith.constant 0.000000e+00 : f32
    %77 = vector.broadcast %cst_52 : f32 to vector<1x8xf32>
    %78 = arith.cmpf oge, %72, %77 : vector<1x8xf32>
    %cst_53 = arith.constant 1.000000e+00 : f32
    %79 = vector.broadcast %cst_53 : f32 to vector<1x8xf32>
    %80 = arith.addf %79, %76 : vector<1x8xf32>
    %cst_54 = arith.constant 1.000000e+00 : f32
    %81 = vector.broadcast %cst_54 : f32 to vector<1x8xf32>
    %82 = arith.divf %81, %80 : vector<1x8xf32>
    %cst_55 = arith.constant 1.000000e+00 : f32
    %83 = vector.broadcast %cst_55 : f32 to vector<1x8xf32>
    %84 = arith.addf %83, %76 : vector<1x8xf32>
    %85 = arith.divf %76, %84 : vector<1x8xf32>
    %86 = arith.select %78, %82, %85 : vector<1x8xi1>, vector<1x8xf32>
    %c0_56 = arith.constant 0 : index
    %c0_57 = arith.constant 0 : index
    %87 = vector.load %arg12[%c0_56, %c0_57] : memref<1x8xf32, #tpu.memory_space<vmem>>, vector<1x8xf32>
    tpu.vector_store %arg12[%c0_56, %c0_57], %86 {strides = array<i32>} : memref<1x8xf32, #tpu.memory_space<vmem>>, vector<1x8xf32>,
    return
  }
  func.func @transform_0(%arg0: i32) -> (i32, i32) {
    %c0_i32 = arith.constant 0 : i32
    %c0_i32_0 = arith.constant 0 : i32
    return %arg0, %c0_i32 : i32, i32
  }
  func.func @transform_1(%arg0: i32) -> (i32, i32) {
    %c0_i32 = arith.constant 0 : i32
    %c0_i32_0 = arith.constant 0 : i32
    return %arg0, %c0_i32 : i32, i32
  }
  func.func @transform_2(%arg0: i32) -> (i32, i32) {
    %c0_i32 = arith.constant 0 : i32
    %c0_i32_0 = arith.constant 0 : i32
    %c0_i32_1 = arith.constant 0 : i32
    return %c0_i32, %c0_i32_0 : i32, i32
  }
  func.func @transform_3(%arg0: i32) -> (i32, i32) {
    %c0_i32 = arith.constant 0 : i32
    %c0_i32_0 = arith.constant 0 : i32
    %c0_i32_1 = arith.constant 0 : i32
    return %c0_i32, %c0_i32_0 : i32, i32
  }
  func.func @transform_4(%arg0: i32) -> (i32, i32) {
    %c0_i32 = arith.constant 0 : i32
    %c0_i32_0 = arith.constant 0 : i32
    %c0_i32_1 = arith.constant 0 : i32
    return %c0_i32, %c0_i32_0 : i32, i32
  }
  func.func @transform_5(%arg0: i32) -> (i32, i32) {
    %c0_i32 = arith.constant 0 : i32
    %c0_i32_0 = arith.constant 0 : i32
    %c0_i32_1 = arith.constant 0 : i32
    return %c0_i32, %c0_i32_0 : i32, i32
  }
  func.func @transform_6(%arg0: i32) -> (i32, i32) {
    %c0_i32 = arith.constant 0 : i32
    %c0_i32_0 = arith.constant 0 : i32
    %c0_i32_1 = arith.constant 0 : i32
    return %c0_i32, %c0_i32_0 : i32, i32
  }
  func.func @transform_7(%arg0: i32) -> (i32, i32) {
    %c0_i32 = arith.constant 0 : i32
    %c0_i32_0 = arith.constant 0 : i32
    %c0_i32_1 = arith.constant 0 : i32
    return %c0_i32, %c0_i32_0 : i32, i32
  }
  func.func @transform_8(%arg0: i32) -> (i32, i32) {
    %c0_i32 = arith.constant 0 : i32
    %c0_i32_0 = arith.constant 0 : i32
    %c0_i32_1 = arith.constant 0 : i32
    return %c0_i32, %c0_i32_0 : i32, i32
  }
  func.func @transform_9(%arg0: i32) -> (i32, i32) {
    %c0_i32 = arith.constant 0 : i32
    %c0_i32_0 = arith.constant 0 : i32
    %c0_i32_1 = arith.constant 0 : i32
    return %c0_i32, %c0_i32_0 : i32, i32
  }
  func.func @transform_10(%arg0: i32) -> (i32, i32) {
    %c0_i32 = arith.constant 0 : i32
    %c0_i32_0 = arith.constant 0 : i32
    return %c0_i32, %arg0 : i32, i32
  }
  func.func @transform_11(%arg0: i32) -> (i32, i32) {
    %c0_i32 = arith.constant 0 : i32
    %c0_i32_0 = arith.constant 0 : i32
    return %c0_i32, %arg0 : i32, i32
  }
}

module attributes {stable_mosaic.version = 11 : i64} {
  func.func @_pairwise_mlp_kernel(%arg0: i32, %arg1: memref<8x32xf32, #tpu.memory_space<vmem>>, %arg2: memref<8x32xf32, #tpu.memory_space<vmem>>, %arg3: memref<32x128xbf16, #tpu.memory_space<vmem>>, %arg4: memref<1x128xf32, #tpu.memory_space<vmem>>, %arg5: memref<128x128xbf16, #tpu.memory_space<vmem>>, %arg6: memref<1x128xf32, #tpu.memory_space<vmem>>, %arg7: memref<128x128xbf16, #tpu.memory_space<vmem>>, %arg8: memref<1x128xf32, #tpu.memory_space<vmem>>, %arg9: memref<1x128xf32, #tpu.memory_space<vmem>>, %arg10: memref<1x1xf32, #tpu.memory_space<vmem>>, %arg11: memref<1x8xf32, #tpu.memory_space<vmem>>, %arg12: memref<1x8xf32, #tpu.memory_space<vmem>>) attributes {dimension_semantics = [#tpu.dimension_semantics<parallel>], iteration_bounds = array<i64: 1>, scalar_prefetch = 0 : i64, scratch_operands = 0 : i64, tpu.core_type = #tpu.core_type<tc>, window_params = [{transform_indices = @transform_0, window_bounds = array<i64: 8, 32>}, {transform_indices = @transform_1, window_bounds = array<i64: 8, 32>}, {pipeline_mode = #tpu.pipeline_mode<synchronous>, transform_indices = @transform_2, window_bounds = array<i64: 32, 128>}, {pipeline_mode = #tpu.pipeline_mode<synchronous>, transform_indices = @transform_3, window_bounds = array<i64: 1, 128>}, {pipeline_mode = #tpu.pipeline_mode<synchronous>, transform_indices = @transform_4, window_bounds = array<i64: 128, 128>}, {pipeline_mode = #tpu.pipeline_mode<synchronous>, transform_indices = @transform_5, window_bounds = array<i64: 1, 128>}, {pipeline_mode = #tpu.pipeline_mode<synchronous>, transform_indices = @transform_6, window_bounds = array<i64: 128, 128>}, {pipeline_mode = #tpu.pipeline_mode<synchronous>, transform_indices = @transform_7, window_bounds = array<i64: 1, 128>}, {pipeline_mode = #tpu.pipeline_mode<synchronous>, transform_indices = @transform_8, window_bounds = array<i64: 1, 128>}, {pipeline_mode = #tpu.pipeline_mode<synchronous>, transform_indices = @transform_9, window_bounds = array<i64: 1, 1>}, {transform_indices = @transform_10, window_bounds = array<i64: 1, 8>}, {transform_indices = @transform_11, window_bounds = array<i64: 1, 8>}]} {
    %c0 = arith.constant 0 : index
    %c0_0 = arith.constant 0 : index
    %0 = vector.load %arg9[%c0, %c0_0] : memref<1x128xf32, #tpu.memory_space<vmem>>, vector<1x128xf32>
    %c0_1 = arith.constant 0 : index
    %c0_2 = arith.constant 0 : index
    %1 = vector.load %arg10[%c0_1, %c0_2] : memref<1x1xf32, #tpu.memory_space<vmem>>, vector<1x1xf32>
    %c0_3 = arith.constant 0 : index
    %c0_4 = arith.constant 0 : index
    %2 = vector.load %arg1[%c0_3, %c0_4] : memref<8x32xf32, #tpu.memory_space<vmem>>, vector<8x32xf32>
    %3 = arith.truncf %2 : vector<8x32xf32> to vector<8x32xbf16>
    %c0_5 = arith.constant 0 : index
    %c0_6 = arith.constant 0 : index
    %4 = vector.load %arg3[%c0_5, %c0_6] : memref<32x128xbf16, #tpu.memory_space<vmem>>, vector<32x128xbf16>
    %cst = arith.constant dense<0.000000e+00> : vector<8x128xf32>
    %5 = tpu.matmul %3, %4, %cst {dimension_numbers = #tpu.dot_dimension_numbers<[1], [0], [0], [1], [0, 0, 1, 1], [], []>} : vector<8x32xbf16>, vector<32x128xbf16>, vector<8x128xf32> -> vector<8x128xf32>
    %c0_7 = arith.constant 0 : index
    %c0_8 = arith.constant 0 : index
    %6 = vector.load %arg4[%c0_7, %c0_8] : memref<1x128xf32, #tpu.memory_space<vmem>>, vector<1x128xf32>
    %7 = vector.broadcast %6 : vector<1x128xf32> to vector<8x128xf32>
    %8 = arith.addf %5, %7 : vector<8x128xf32>
    %cst_9 = arith.constant 0.000000e+00 : f32
    %9 = vector.broadcast %cst_9 : f32 to vector<8x128xf32>
    %10 = arith.maximumf %8, %9 : vector<8x128xf32>
    %11 = arith.truncf %10 : vector<8x128xf32> to vector<8x128xbf16>
    %c0_10 = arith.constant 0 : index
    %c0_11 = arith.constant 0 : index
    %12 = vector.load %arg5[%c0_10, %c0_11] : memref<128x128xbf16, #tpu.memory_space<vmem>>, vector<128x128xbf16>
    %cst_12 = arith.constant dense<0.000000e+00> : vector<8x128xf32>
    %13 = tpu.matmul %11, %12, %cst_12 {dimension_numbers = #tpu.dot_dimension_numbers<[1], [0], [0], [1], [0, 0, 1, 1], [], []>} : vector<8x128xbf16>, vector<128x128xbf16>, vector<8x128xf32> -> vector<8x128xf32>
    %c0_13 = arith.constant 0 : index
    %c0_14 = arith.constant 0 : index
    %14 = vector.load %arg6[%c0_13, %c0_14] : memref<1x128xf32, #tpu.memory_space<vmem>>, vector<1x128xf32>
    %15 = vector.broadcast %14 : vector<1x128xf32> to vector<8x128xf32>
    %16 = arith.addf %13, %15 : vector<8x128xf32>
    %cst_15 = arith.constant 0.000000e+00 : f32
    %17 = vector.broadcast %cst_15 : f32 to vector<8x128xf32>
    %18 = arith.maximumf %16, %17 : vector<8x128xf32>
    %19 = arith.truncf %18 : vector<8x128xf32> to vector<8x128xbf16>
    %c0_16 = arith.constant 0 : index
    %c0_17 = arith.constant 0 : index
    %20 = vector.load %arg7[%c0_16, %c0_17] : memref<128x128xbf16, #tpu.memory_space<vmem>>, vector<128x128xbf16>
    %cst_18 = arith.constant dense<0.000000e+00> : vector<8x128xf32>
    %21 = tpu.matmul %19, %20, %cst_18 {dimension_numbers = #tpu.dot_dimension_numbers<[1], [0], [0], [1], [0, 0, 1, 1], [], []>} : vector<8x128xbf16>, vector<128x128xbf16>, vector<8x128xf32> -> vector<8x128xf32>
    %c0_19 = arith.constant 0 : index
    %c0_20 = arith.constant 0 : index
    %22 = vector.load %arg8[%c0_19, %c0_20] : memref<1x128xf32, #tpu.memory_space<vmem>>, vector<1x128xf32>
    %23 = vector.broadcast %22 : vector<1x128xf32> to vector<8x128xf32>
    %24 = arith.addf %21, %23 : vector<8x128xf32>
    %cst_21 = arith.constant 0.000000e+00 : f32
    %25 = vector.broadcast %cst_21 : f32 to vector<8x128xf32>
    %26 = arith.maximumf %24, %25 : vector<8x128xf32>
    %cst_22 = arith.constant dense<0.000000e+00> : vector<1x8xf32>
    %27 = tpu.matmul %0, %26, %cst_22 {dimension_numbers = #tpu.dot_dimension_numbers<[1], [1], [0], [0], [0, 0, 1, 0], [], []>} : vector<1x128xf32>, vector<8x128xf32>, vector<1x8xf32> -> vector<1x8xf32>
    %28 = vector.broadcast %1 : vector<1x1xf32> to vector<1x8xf32>
    %29 = arith.addf %27, %28 : vector<1x8xf32>
    %30 = math.absf %29 : vector<1x8xf32>
    %cst_23 = arith.constant 0.000000e+00 : f32
    %31 = vector.broadcast %cst_23 : f32 to vector<1x8xf32>
    %32 = arith.subf %31, %30 : vector<1x8xf32>
    %33 = math.exp %32 : vector<1x8xf32>
    %cst_24 = arith.constant 0.000000e+00 : f32
    %34 = vector.broadcast %cst_24 : f32 to vector<1x8xf32>
    %35 = arith.cmpf oge, %29, %34 : vector<1x8xf32>
    %cst_25 = arith.constant 1.000000e+00 : f32
    %36 = vector.broadcast %cst_25 : f32 to vector<1x8xf32>
    %37 = arith.addf %36, %33 : vector<1x8xf32>
    %cst_26 = arith.constant 1.000000e+00 : f32
    %38 = vector.broadcast %cst_26 : f32 to vector<1x8xf32>
    %39 = arith.divf %38, %37 : vector<1x8xf32>
    %cst_27 = arith.constant 1.000000e+00 : f32
    %40 = vector.broadcast %cst_27 : f32 to vector<1x8xf32>
    %41 = arith.addf %40, %33 : vector<1x8xf32>
    %42 = arith.divf %33, %41 : vector<1x8xf32>
    %43 = arith.select %35, %39, %42 : vector<1x8xi1>, vector<1x8xf32>
    %c0_28 = arith.constant 0 : index
    %c0_29 = arith.constant 0 : index
    %44 = vector.load %arg11[%c0_28, %c0_29] : memref<1x8xf32, #tpu.memory_space<vmem>>, vector<1x8xf32>
    tpu.vector_store %arg11[%c0_28, %c0_29], %43 {strides = array<i32>} : memref<1x8xf32, #tpu.memory_space<vmem>>, vector<1x8xf32>,
    %c0_30 = arith.constant 0 : index
    %c0_31 = arith.constant 0 : index
    %45 = vector.load %arg2[%c0_30, %c0_31] : memref<8x32xf32, #tpu.memory_space<vmem>>, vector<8x32xf32>
    %46 = arith.truncf %45 : vector<8x32xf32> to vector<8x32xbf16>
    %c0_32 = arith.constant 0 : index
    %c0_33 = arith.constant 0 : index
    %47 = vector.load %arg3[%c0_32, %c0_33] : memref<32x128xbf16, #tpu.memory_space<vmem>>, vector<32x128xbf16>
    %cst_34 = arith.constant dense<0.000000e+00> : vector<8x128xf32>
    %48 = tpu.matmul %46, %47, %cst_34 {dimension_numbers = #tpu.dot_dimension_numbers<[1], [0], [0], [1], [0, 0, 1, 1], [], []>} : vector<8x32xbf16>, vector<32x128xbf16>, vector<8x128xf32> -> vector<8x128xf32>
    %c0_35 = arith.constant 0 : index
    %c0_36 = arith.constant 0 : index
    %49 = vector.load %arg4[%c0_35, %c0_36] : memref<1x128xf32, #tpu.memory_space<vmem>>, vector<1x128xf32>
    %50 = vector.broadcast %49 : vector<1x128xf32> to vector<8x128xf32>
    %51 = arith.addf %48, %50 : vector<8x128xf32>
    %cst_37 = arith.constant 0.000000e+00 : f32
    %52 = vector.broadcast %cst_37 : f32 to vector<8x128xf32>
    %53 = arith.maximumf %51, %52 : vector<8x128xf32>
    %54 = arith.truncf %53 : vector<8x128xf32> to vector<8x128xbf16>
    %c0_38 = arith.constant 0 : index
    %c0_39 = arith.constant 0 : index
    %55 = vector.load %arg5[%c0_38, %c0_39] : memref<128x128xbf16, #tpu.memory_space<vmem>>, vector<128x128xbf16>
    %cst_40 = arith.constant dense<0.000000e+00> : vector<8x128xf32>
    %56 = tpu.matmul %54, %55, %cst_40 {dimension_numbers = #tpu.dot_dimension_numbers<[1], [0], [0], [1], [0, 0, 1, 1], [], []>} : vector<8x128xbf16>, vector<128x128xbf16>, vector<8x128xf32> -> vector<8x128xf32>
    %c0_41 = arith.constant 0 : index
    %c0_42 = arith.constant 0 : index
    %57 = vector.load %arg6[%c0_41, %c0_42] : memref<1x128xf32, #tpu.memory_space<vmem>>, vector<1x128xf32>
    %58 = vector.broadcast %57 : vector<1x128xf32> to vector<8x128xf32>
    %59 = arith.addf %56, %58 : vector<8x128xf32>
    %cst_43 = arith.constant 0.000000e+00 : f32
    %60 = vector.broadcast %cst_43 : f32 to vector<8x128xf32>
    %61 = arith.maximumf %59, %60 : vector<8x128xf32>
    %62 = arith.truncf %61 : vector<8x128xf32> to vector<8x128xbf16>
    %c0_44 = arith.constant 0 : index
    %c0_45 = arith.constant 0 : index
    %63 = vector.load %arg7[%c0_44, %c0_45] : memref<128x128xbf16, #tpu.memory_space<vmem>>, vector<128x128xbf16>
    %cst_46 = arith.constant dense<0.000000e+00> : vector<8x128xf32>
    %64 = tpu.matmul %62, %63, %cst_46 {dimension_numbers = #tpu.dot_dimension_numbers<[1], [0], [0], [1], [0, 0, 1, 1], [], []>} : vector<8x128xbf16>, vector<128x128xbf16>, vector<8x128xf32> -> vector<8x128xf32>
    %c0_47 = arith.constant 0 : index
    %c0_48 = arith.constant 0 : index
    %65 = vector.load %arg8[%c0_47, %c0_48] : memref<1x128xf32, #tpu.memory_space<vmem>>, vector<1x128xf32>
    %66 = vector.broadcast %65 : vector<1x128xf32> to vector<8x128xf32>
    %67 = arith.addf %64, %66 : vector<8x128xf32>
    %cst_49 = arith.constant 0.000000e+00 : f32
    %68 = vector.broadcast %cst_49 : f32 to vector<8x128xf32>
    %69 = arith.maximumf %67, %68 : vector<8x128xf32>
    %cst_50 = arith.constant dense<0.000000e+00> : vector<1x8xf32>
    %70 = tpu.matmul %0, %69, %cst_50 {dimension_numbers = #tpu.dot_dimension_numbers<[1], [1], [0], [0], [0, 0, 1, 0], [], []>} : vector<1x128xf32>, vector<8x128xf32>, vector<1x8xf32> -> vector<1x8xf32>
    %71 = vector.broadcast %1 : vector<1x1xf32> to vector<1x8xf32>
    %72 = arith.addf %70, %71 : vector<1x8xf32>
    %73 = math.absf %72 : vector<1x8xf32>
    %cst_51 = arith.constant 0.000000e+00 : f32
    %74 = vector.broadcast %cst_51 : f32 to vector<1x8xf32>
    %75 = arith.subf %74, %73 : vector<1x8xf32>
    %76 = math.exp %75 : vector<1x8xf32>
    %cst_52 = arith.constant 0.000000e+00 : f32
    %77 = vector.broadcast %cst_52 : f32 to vector<1x8xf32>
    %78 = arith.cmpf oge, %72, %77 : vector<1x8xf32>
    %cst_53 = arith.constant 1.000000e+00 : f32
    %79 = vector.broadcast %cst_53 : f32 to vector<1x8xf32>
    %80 = arith.addf %79, %76 : vector<1x8xf32>
    %cst_54 = arith.constant 1.000000e+00 : f32
    %81 = vector.broadcast %cst_54 : f32 to vector<1x8xf32>
    %82 = arith.divf %81, %80 : vector<1x8xf32>
    %cst_55 = arith.constant 1.000000e+00 : f32
    %83 = vector.broadcast %cst_55 : f32 to vector<1x8xf32>
    %84 = arith.addf %83, %76 : vector<1x8xf32>
    %85 = arith.divf %76, %84 : vector<1x8xf32>
    %86 = arith.select %78, %82, %85 : vector<1x8xi1>, vector<1x8xf32>
    %c0_56 = arith.constant 0 : index
    %c0_57 = arith.constant 0 : index
    %87 = vector.load %arg12[%c0_56, %c0_57] : memref<1x8xf32, #tpu.memory_space<vmem>>, vector<1x8xf32>
    tpu.vector_store %arg12[%c0_56, %c0_57], %86 {strides = array<i32>} : memref<1x8xf32, #tpu.memory_space<vmem>>, vector<1x8xf32>,
    return
  }
  func.func @transform_0(%arg0: i32) -> (i32, i32) {
    %c0_i32 = arith.constant 0 : i32
    %c0_i32_0 = arith.constant 0 : i32
    return %arg0, %c0_i32 : i32, i32
  }
  func.func @transform_1(%arg0: i32) -> (i32, i32) {
    %c0_i32 = arith.constant 0 : i32
    %c0_i32_0 = arith.constant 0 : i32
    return %arg0, %c0_i32 : i32, i32
  }
  func.func @transform_2(%arg0: i32) -> (i32, i32) {
    %c0_i32 = arith.constant 0 : i32
    %c0_i32_0 = arith.constant 0 : i32
    %c0_i32_1 = arith.constant 0 : i32
    return %c0_i32, %c0_i32_0 : i32, i32
  }
  func.func @transform_3(%arg0: i32) -> (i32, i32) {
    %c0_i32 = arith.constant 0 : i32
    %c0_i32_0 = arith.constant 0 : i32
    %c0_i32_1 = arith.constant 0 : i32
    return %c0_i32, %c0_i32_0 : i32, i32
  }
  func.func @transform_4(%arg0: i32) -> (i32, i32) {
    %c0_i32 = arith.constant 0 : i32
    %c0_i32_0 = arith.constant 0 : i32
    %c0_i32_1 = arith.constant 0 : i32
    return %c0_i32, %c0_i32_0 : i32, i32
  }
  func.func @transform_5(%arg0: i32) -> (i32, i32) {
    %c0_i32 = arith.constant 0 : i32
    %c0_i32_0 = arith.constant 0 : i32
    %c0_i32_1 = arith.constant 0 : i32
    return %c0_i32, %c0_i32_0 : i32, i32
  }
  func.func @transform_6(%arg0: i32) -> (i32, i32) {
    %c0_i32 = arith.constant 0 : i32
    %c0_i32_0 = arith.constant 0 : i32
    %c0_i32_1 = arith.constant 0 : i32
    return %c0_i32, %c0_i32_0 : i32, i32
  }
  func.func @transform_7(%arg0: i32) -> (i32, i32) {
    %c0_i32 = arith.constant 0 : i32
    %c0_i32_0 = arith.constant 0 : i32
    %c0_i32_1 = arith.constant 0 : i32
    return %c0_i32, %c0_i32_0 : i32, i32
  }
  func.func @transform_8(%arg0: i32) -> (i32, i32) {
    %c0_i32 = arith.constant 0 : i32
    %c0_i32_0 = arith.constant 0 : i32
    %c0_i32_1 = arith.constant 0 : i32
    return %c0_i32, %c0_i32_0 : i32, i32
  }
  func.func @transform_9(%arg0: i32) -> (i32, i32) {
    %c0_i32 = arith.constant 0 : i32
    %c0_i32_0 = arith.constant 0 : i32
    %c0_i32_1 = arith.constant 0 : i32
    return %c0_i32, %c0_i32_0 : i32, i32
  }
  func.func @transform_10(%arg0: i32) -> (i32, i32) {
    %c0_i32 = arith.constant 0 : i32
    %c0_i32_0 = arith.constant 0 : i32
    return %c0_i32, %arg0 : i32, i32
  }
  func.func @transform_11(%arg0: i32) -> (i32, i32) {
    %c0_i32 = arith.constant 0 : i32
    %c0_i32_0 = arith.constant 0 : i32
    return %c0_i32, %arg0 : i32, i32
  }
}

</mosaic_0001>

<llo_original>
// kernel: tpu_custom_call.1
$region0: #{tpu_custom_call.1}
  #allocation0 [shape = 'u32[]', space=smem, size = 0x4, offset = 0x4, fixed_abs, tag = 'smem constant byte address 0x4 - core index']
  #allocation1 [shape = 'u32[144,128]{1,0:T(1,128)}', space=vmem, size = 0x12000, scoped, tag = 'internal scratch']
  #allocation2 [shape = 'f32[1,1]{1,0:T(1,128)S(1)}', space=vmem, size = 0x200, scoped, tag = 'scoped memory for tpu_custom_call.1']
  %s0 = inlined_call_operand.hbm [shape: f32[8,32], index: 0, kind: input, shape index: {}]
  %s1 = inlined_call_operand.hbm [shape: f32[8,32], index: 1, kind: input, shape index: {}]
  %s2 = inlined_call_operand.hbm [shape: bf16[32,128], index: 2, kind: input, shape index: {}]
  %s3 = inlined_call_operand.vmem [shape: f32[1,128], index: 3, kind: input, shape index: {}]
  %s4 = inlined_call_operand.hbm [shape: bf16[128,128], index: 4, kind: input, shape index: {}]
  %s5 = inlined_call_operand.vmem [shape: f32[1,128], index: 5, kind: input, shape index: {}]
  %s6 = inlined_call_operand.hbm [shape: bf16[128,128], index: 6, kind: input, shape index: {}]
  %s7 = inlined_call_operand.vmem [shape: f32[1,128], index: 7, kind: input, shape index: {}]
  %s8 = inlined_call_operand.vmem [shape: f32[1,128], index: 8, kind: input, shape index: {}]
  %s9 = inlined_call_operand.<no memory space> [shape: f32[1,1], index: 9, kind: input, shape index: {}]
  %s10 = inlined_call_operand.hbm [shape: f32[1,8], index: 10, kind: output, shape index: {0}]
  %s11 = inlined_call_operand.hbm [shape: f32[1,8], index: 11, kind: output, shape index: {1}]
  %12 = xla_tuple %s10, %s11
  %s13 = sld [smem:[#allocation0]]
  $region78: #{tpu_custom_call.1} parent=0
    _
  %s15 = ssub.s32 1, %s13
  %s16 = scalar_select 0, %s15, %s13
  %v17 = vstv %s9
  %18 = vst [vmem:[#allocation2] sm:$0x1] %v17
  $region1: #{tpu_custom_call.1} parent=0
    #allocation3 [shape = 'u8[4096]{0}', space=vmem, size = 0x1000, scoped, tag = 'input window, operand 0, single buffered']
    #allocation4 [shape = 's32[1]{0}', space=sflag, size = 0x4, scoped, tag = 'scoped memory for tpu_custom_call.1']
    #allocation5 [shape = 's32[1]{0}', space=sflag, size = 0x4, scoped, tag = 'scoped memory for tpu_custom_call.1']
    #allocation6 [shape = 'u8[4096]{0}', space=vmem, size = 0x1000, scoped, tag = 'input window, operand 1, single buffered']
    #allocation7 [shape = 's32[1]{0}', space=sflag, size = 0x4, scoped, tag = 'scoped memory for tpu_custom_call.1']
    #allocation8 [shape = 'u8[8192]{0}', space=vmem, size = 0x2000, scoped, tag = 'input window, operand 2, single buffered']
    #allocation9 [shape = 'u8[32768]{0}', space=vmem, size = 0x8000, scoped, tag = 'input window, operand 4, single buffered']
    #allocation10 [shape = 's32[1]{0}', space=sflag, size = 0x4, scoped, tag = 'scoped memory for tpu_custom_call.1']
    #allocation11 [shape = 'u8[32768]{0}', space=vmem, size = 0x8000, scoped, tag = 'input window, operand 6, single buffered']
    #allocation12 [shape = 'u8[512]{0}', space=vmem, size = 0x400, scoped, tag = 'output window, operand 0, single buffered']
    #allocation13 [shape = 'u8[512]{0}', space=vmem, size = 0x400, scoped, tag = 'output window, operand 1, single buffered']
    #allocation14 [shape = 's32[1]{0}', space=sflag, size = 0x4, scoped, tag = 'scoped memory for tpu_custom_call.1']
    %19 = vsyncpa [#allocation4], 0
    %20 = vsyncpa [#allocation7], 0
    %21 = vsyncpa [#allocation10], 0
    %22 = vsyncpa [#allocation5], 0
    %23 = vsyncpa [#allocation14], 0
    // Predicated region
    $region2: #{tpu_custom_call.1} parent=1 // pred_check
      _
    $region3: #{tpu_custom_call.1} parent=1 // pred_check_branch
      %25 = sbr.rel (0) target = $region5
    $region4: #{tpu_custom_call.1} parent=1 // pred_region
      %s27 = ssub.s32 128, 128
      %28 = vsyncadd [#allocation4], %s27
      %s30 = sshll.u32 [#allocation3], 4
      %s31 = int_to_ptr.vmem [resolvable:$true] %s30
      %33 = dma.hbm_to_vmem [thread:$0]  %s0, 128, %s31, [#allocation4]
    $region5: #{tpu_custom_call.1} parent=1 // pred_fallthru
      _
    // Predicated region
    $region6: #{tpu_custom_call.1} parent=1 // pred_check
      _
    $region7: #{tpu_custom_call.1} parent=1 // pred_check_branch
      %35 = sbr.rel (0) target = $region9
    $region8: #{tpu_custom_call.1} parent=1 // pred_region
      %s37 = ssub.s32 128, 128
      %38 = vsyncadd [#allocation7], %s37
      %s40 = sshll.u32 [#allocation6], 4
      %s41 = int_to_ptr.vmem [resolvable:$true] %s40
      %43 = dma.hbm_to_vmem [thread:$0]  %s1, 128, %s41, [#allocation7]
    $region9: #{tpu_custom_call.1} parent=1 // pred_fallthru
      _
    // Predicated region
    $region10: #{tpu_custom_call.1} parent=1 // pred_check
      _
    $region11: #{tpu_custom_call.1} parent=1 // pred_check_branch
      %45 = sbr.rel (0) target = $region13
    $region12: #{tpu_custom_call.1} parent=1 // pred_region
      %s47 = ssub.s32 256, 256
      %48 = vsyncadd [#allocation7], %s47
      %s49 = sshll.u32 [#allocation8], 4
      %s50 = int_to_ptr.vmem [resolvable:$true] %s49
      %55 = dma.hbm_to_vmem [thread:$0]  %s2, 256, %s50, [#allocation7], 64, 64, 4
    $region13: #{tpu_custom_call.1} parent=1 // pred_fallthru
      _
    // Predicated region
    $region14: #{tpu_custom_call.1} parent=1 // pred_check
      _
    $region15: #{tpu_custom_call.1} parent=1 // pred_check_branch
      %57 = sbr.rel (0) target = $region17
    $region16: #{tpu_custom_call.1} parent=1 // pred_region
      _
    $region17: #{tpu_custom_call.1} parent=1 // pred_fallthru
      _
    // Predicated region
    $region18: #{tpu_custom_call.1} parent=1 // pred_check
      _
    $region19: #{tpu_custom_call.1} parent=1 // pred_check_branch
      %59 = sbr.rel (0) target = $region21
    $region20: #{tpu_custom_call.1} parent=1 // pred_region
      %s61 = ssub.s32 1024, 1024
      %62 = vsyncadd [#allocation10], %s61
      %s63 = sshll.u32 [#allocation9], 4
      %s64 = int_to_ptr.vmem [resolvable:$true] %s63
      %69 = dma.hbm_to_vmem [thread:$0]  %s4, 1024, %s64, [#allocation10], 64, 64, 4
    $region21: #{tpu_custom_call.1} parent=1 // pred_fallthru
      _
    // Predicated region
    $region22: #{tpu_custom_call.1} parent=1 // pred_check
      _
    $region23: #{tpu_custom_call.1} parent=1 // pred_check_branch
      %71 = sbr.rel (0) target = $region25
    $region24: #{tpu_custom_call.1} parent=1 // pred_region
      _
    $region25: #{tpu_custom_call.1} parent=1 // pred_fallthru
      _
    // Predicated region
    $region26: #{tpu_custom_call.1} parent=1 // pred_check
      _
    $region27: #{tpu_custom_call.1} parent=1 // pred_check_branch
      %73 = sbr.rel (0) target = $region29
    $region28: #{tpu_custom_call.1} parent=1 // pred_region
      %s75 = ssub.s32 1024, 1024
      %76 = vsyncadd [#allocation10], %s75
      %s77 = sshll.u32 [#allocation11], 4
      %s78 = int_to_ptr.vmem [resolvable:$true] %s77
      %83 = dma.hbm_to_vmem [thread:$0]  %s6, 1024, %s78, [#allocation10], 64, 64, 4
    $region29: #{tpu_custom_call.1} parent=1 // pred_fallthru
      _
    // Predicated region
    $region30: #{tpu_custom_call.1} parent=1 // pred_check
      _
    $region31: #{tpu_custom_call.1} parent=1 // pred_check_branch
      %85 = sbr.rel (0) target = $region33
    $region32: #{tpu_custom_call.1} parent=1 // pred_region
      _
    $region33: #{tpu_custom_call.1} parent=1 // pred_fallthru
      _
    // Predicated region
    $region34: #{tpu_custom_call.1} parent=1 // pred_check
      _
    $region35: #{tpu_custom_call.1} parent=1 // pred_check_branch
      %87 = sbr.rel (0) target = $region37
    $region36: #{tpu_custom_call.1} parent=1 // pred_region
      _
    $region37: #{tpu_custom_call.1} parent=1 // pred_fallthru
      _
    // Predicated region
    $region38: #{tpu_custom_call.1} parent=1 // pred_check
      _
    $region39: #{tpu_custom_call.1} parent=1 // pred_check_branch
      %89 = sbr.rel (0) target = $region41
    $region40: #{tpu_custom_call.1} parent=1 // pred_region
      _
    $region41: #{tpu_custom_call.1} parent=1 // pred_fallthru
      _
    // Predicated region
    $region42: #{tpu_custom_call.1} parent=1 // pred_check
      _
    $region43: #{tpu_custom_call.1} parent=1 // pred_check_branch
      %91 = sbr.rel (0) target = $region45
    $region44: #{tpu_custom_call.1} parent=1 // pred_region
      %92 = dma.done [#allocation4], 128
    $region45: #{tpu_custom_call.1} parent=1 // pred_fallthru
      _
    // Predicated region
    $region46: #{tpu_custom_call.1} parent=1 // pred_check
      _
    $region47: #{tpu_custom_call.1} parent=1 // pred_check_branch
      %94 = sbr.rel (0) target = $region49
    $region48: #{tpu_custom_call.1} parent=1 // pred_region
      %95 = dma.done [#allocation7], 128
    $region49: #{tpu_custom_call.1} parent=1 // pred_fallthru
      _
    // Predicated region
    $region50: #{tpu_custom_call.1} parent=1 // pred_check
      _
    $region51: #{tpu_custom_call.1} parent=1 // pred_check_branch
      %97 = sbr.rel (0) target = $region53
    $region52: #{tpu_custom_call.1} parent=1 // pred_region
      %98 = dma.done [#allocation7], 256
    $region53: #{tpu_custom_call.1} parent=1 // pred_fallthru
      _
    // Predicated region
    $region54: #{tpu_custom_call.1} parent=1 // pred_check
      _
    $region55: #{tpu_custom_call.1} parent=1 // pred_check_branch
      %100 = sbr.rel (0) target = $region57
    $region56: #{tpu_custom_call.1} parent=1 // pred_region
      %101 = dma.done [#allocation10], 1024
    $region57: #{tpu_custom_call.1} parent=1 // pred_fallthru
      _
    // Predicated region
    $region58: #{tpu_custom_call.1} parent=1 // pred_check
      _
    $region59: #{tpu_custom_call.1} parent=1 // pred_check_branch
      %103 = sbr.rel (0) target = $region61
    $region60: #{tpu_custom_call.1} parent=1 // pred_region
      %104 = dma.done [#allocation10], 1024
    $region61: #{tpu_custom_call.1} parent=1 // pred_fallthru
      _
    %v106 = vld [vmem:[%s8] sm:$0x1]
    %v107 = vld [vmem:[#allocation2] sm:$0x1]
    %v108 = vld [vmem:[#allocation3] sm:$0xff]
    %v109 = vpack.c.bf16 %v108, %v108
    %v110 = vld [vmem:[#allocation8] sm:$0xf]
    %v111 = vld [vmem:[#allocation8 + $0x4] sm:$0xf]
    %v112 = vld [vmem:[#allocation8 + $0x8] sm:$0xf]
    %v113 = vld [vmem:[#allocation8 + $0xc] sm:$0xf]
    %v114 = vld [vmem:[%s3] sm:$0x1]
    %v116 = vlaneseq
    %v117 = vshrl.u32 %v116, 7
    %v118 = vsub.s32 0, %v117
    %v119 = vrot.slane %v114, %v118
    %v125 = vunpack.c.l.b16 %v110
    %v126 = vunpack.c.l.b16 %v111
    %v127 = vunpack.c.l.b16 %v112
    %v128 = vunpack.c.l.b16 %v113
    %v129 = vpack.c.b16 %v126, %v125
    %v130 = vpack.c.b16 %v128, %v127
    %vm133 = vcmask 261120
    %v135 = vsel %vm133, %v109, 0
    %137 = vmatprep.subr.bf16.mxu0 0
    %138 = vmatpush1.bf16.msra.mxu0 %v129
    %139 = vmatprep.subr.bf16.mxu0 0
    %140 = vmatpush1.bf16.msra.mxu0 %v130
    %141 = vmatprep.subr.bf16.mxu0 0
    %142 = vmatpush1.bf16.msra.mxu0 0
    %143 = vmatprep.subr.bf16.mxu0 0
    %144 = vmatpush1.bf16.msra.mxu0 0
    %145 = vmatprep.subr.bf16.mxu0 0
    %146 = vmatpush1.bf16.msra.mxu0 0
    %147 = vmatprep.subr.bf16.mxu0 0
    %148 = vmatpush1.bf16.msra.mxu0 0
    %149 = vmatprep.subr.bf16.mxu0 0
    %150 = vmatpush1.bf16.msra.mxu0 0
    %151 = vmatprep.subr.bf16.mxu0 0
    %152 = vmatpush1.bf16.msra.mxu0 0
    %153 = vmatprep.subr.bf16.mxu0 0
    %154 = vmatpush1.bf16.msra.mxu0 0
    %155 = vmatprep.subr.bf16.mxu0 0
    %156 = vmatpush1.bf16.msra.mxu0 0
    %157 = vmatprep.subr.bf16.mxu0 0
    %158 = vmatpush1.bf16.msra.mxu0 0
    %159 = vmatprep.subr.bf16.mxu0 0
    %160 = vmatpush1.bf16.msra.mxu0 0
    %161 = vmatprep.subr.bf16.mxu0 0
    %162 = vmatpush1.bf16.msra.mxu0 0
    %163 = vmatprep.subr.bf16.mxu0 0
    %164 = vmatpush1.bf16.msra.mxu0 0
    %165 = vmatprep.subr.bf16.mxu0 0
    %166 = vmatpush1.bf16.msra.mxu0 0
    %167 = vmatprep.subr.bf16.mxu0 0
    %168 = vmatpush1.bf16.msra.mxu0 0
    %169 = vmatprep.mubr.bf16.mxu0 0
    %170 = vmatmul.mubr.bf16.gmra.mrb[0].mxu0 %v135
    %v171 = vpop.f32.mrb[0].mxu0
    %v172 = vadd.f32 %v119, %v171
    %v173 = vpop.f32.mrb[0].mxu0
    %v174 = vpop.f32.mrb[0].mxu0
    %v175 = vpop.f32.mrb[0].mxu0
    %176 = vdwg.mxu0
    %v177 = vmax.f32 %v172, 0.0
    %v178 = vpack.c.bf16 %v177, %v177
    %v179 = vld [vmem:[#allocation9] sm:$0xf]
    %v180 = vld [vmem:[#allocation9 + $0x4] sm:$0xf]
    %v181 = vld [vmem:[#allocation9 + $0x8] sm:$0xf]
    %v182 = vld [vmem:[#allocation9 + $0xc] sm:$0xf]
    %v183 = vld [vmem:[#allocation9 + $0x10] sm:$0xf]
    %v184 = vld [vmem:[#allocation9 + $0x14] sm:$0xf]
    %v185 = vld [vmem:[#allocation9 + $0x18] sm:$0xf]
    %v186 = vld [vmem:[#allocation9 + $0x1c] sm:$0xf]
    %v187 = vld [vmem:[#allocation9 + $0x20] sm:$0xf]
    %v188 = vld [vmem:[#allocation9 + $0x24] sm:$0xf]
    %v189 = vld [vmem:[#allocation9 + $0x28] sm:$0xf]
    %v190 = vld [vmem:[#allocation9 + $0x2c] sm:$0xf]
    %v191 = vld [vmem:[#allocation9 + $0x30] sm:$0xf]
    %v192 = vld [vmem:[#allocation9 + $0x34] sm:$0xf]
    %v193 = vld [vmem:[#allocation9 + $0x38] sm:$0xf]
    %v194 = vld [vmem:[#allocation9 + $0x3c] sm:$0xf]
    %v195 = vld [vmem:[%s5] sm:$0x1]
    %v197 = vlaneseq
    %v198 = vshrl.u32 %v197, 7
    %v199 = vsub.s32 0, %v198
    %v200 = vrot.slane %v195, %v199
    %v218 = vunpack.c.l.b16 %v179
    %v219 = vunpack.c.l.b16 %v180
    %v220 = vunpack.c.l.b16 %v181
    %v221 = vunpack.c.l.b16 %v182
    %v222 = vunpack.c.l.b16 %v183
    %v223 = vunpack.c.l.b16 %v184
    %v224 = vunpack.c.l.b16 %v185
    %v225 = vunpack.c.l.b16 %v186
    %v226 = vunpack.c.l.b16 %v187
    %v227 = vunpack.c.l.b16 %v188
    %v228 = vunpack.c.l.b16 %v189
    %v229 = vunpack.c.l.b16 %v190
    %v230 = vunpack.c.l.b16 %v191
    %v231 = vunpack.c.l.b16 %v192
    %v232 = vunpack.c.l.b16 %v193
    %v233 = vunpack.c.l.b16 %v194
    %v234 = vpack.c.b16 %v219, %v218
    %v235 = vpack.c.b16 %v221, %v220
    %v236 = vpack.c.b16 %v223, %v222
    %v237 = vpack.c.b16 %v225, %v224
    %v238 = vpack.c.b16 %v227, %v226
    %v239 = vpack.c.b16 %v229, %v228
    %v240 = vpack.c.b16 %v231, %v230
    %v241 = vpack.c.b16 %v233, %v232
    %250 = vmatprep.subr.bf16.mxu0 0
    %251 = vmatpush1.bf16.msra.mxu0 %v234
    %252 = vmatprep.subr.bf16.mxu0 0
    %253 = vmatpush1.bf16.msra.mxu0 %v235
    %254 = vmatprep.subr.bf16.mxu0 0
    %255 = vmatpush1.bf16.msra.mxu0 %v236
    %256 = vmatprep.subr.bf16.mxu0 0
    %257 = vmatpush1.bf16.msra.mxu0 %v237
    %258 = vmatprep.subr.bf16.mxu0 0
    %259 = vmatpush1.bf16.msra.mxu0 %v238
    %260 = vmatprep.subr.bf16.mxu0 0
    %261 = vmatpush1.bf16.msra.mxu0 %v239
    %262 = vmatprep.subr.bf16.mxu0 0
    %263 = vmatpush1.bf16.msra.mxu0 %v240
    %264 = vmatprep.subr.bf16.mxu0 0
    %265 = vmatpush1.bf16.msra.mxu0 %v241
    %266 = vmatprep.subr.bf16.mxu0 0
    %267 = vmatpush1.bf16.msra.mxu0 0
    %268 = vmatprep.subr.bf16.mxu0 0
    %269 = vmatpush1.bf16.msra.mxu0 0
    %270 = vmatprep.subr.bf16.mxu0 0
    %271 = vmatpush1.bf16.msra.mxu0 0
    %272 = vmatprep.subr.bf16.mxu0 0
    %273 = vmatpush1.bf16.msra.mxu0 0
    %274 = vmatprep.subr.bf16.mxu0 0
    %275 = vmatpush1.bf16.msra.mxu0 0
    %276 = vmatprep.subr.bf16.mxu0 0
    %277 = vmatpush1.bf16.msra.mxu0 0
    %278 = vmatprep.subr.bf16.mxu0 0
    %279 = vmatpush1.bf16.msra.mxu0 0
    %280 = vmatprep.subr.bf16.mxu0 0
    %281 = vmatpush1.bf16.msra.mxu0 0
    %282 = vmatprep.mubr.bf16.mxu0 0
    %283 = vmatmul.mubr.bf16.gmra.mrb[0].mxu0 %v178
    %v284 = vpop.f32.mrb[0].mxu0
    %v285 = vadd.f32 %v200, %v284
    %v286 = vpop.f32.mrb[0].mxu0
    %v287 = vpop.f32.mrb[0].mxu0
    %v288 = vpop.f32.mrb[0].mxu0
    %289 = vdwg.mxu0
    %v290 = vmax.f32 %v285, 0.0
    %v291 = vpack.c.bf16 %v290, %v290
    %v292 = vld [vmem:[#allocation11] sm:$0xf]
    %v293 = vld [vmem:[#allocation11 + $0x4] sm:$0xf]
    %v294 = vld [vmem:[#allocation11 + $0x8] sm:$0xf]
    %v295 = vld [vmem:[#allocation11 + $0xc] sm:$0xf]
    %v296 = vld [vmem:[#allocation11 + $0x10] sm:$0xf]
    %v297 = vld [vmem:[#allocation11 + $0x14] sm:$0xf]
    %v298 = vld [vmem:[#allocation11 + $0x18] sm:$0xf]
    %v299 = vld [vmem:[#allocation11 + $0x1c] sm:$0xf]
    %v300 = vld [vmem:[#allocation11 + $0x20] sm:$0xf]
    %v301 = vld [vmem:[#allocation11 + $0x24] sm:$0xf]
    %v302 = vld [vmem:[#allocation11 + $0x28] sm:$0xf]
    %v303 = vld [vmem:[#allocation11 + $0x2c] sm:$0xf]
    %v304 = vld [vmem:[#allocation11 + $0x30] sm:$0xf]
    %v305 = vld [vmem:[#allocation11 + $0x34] sm:$0xf]
    %v306 = vld [vmem:[#allocation11 + $0x38] sm:$0xf]
    %v307 = vld [vmem:[#allocation11 + $0x3c] sm:$0xf]
    %v308 = vld [vmem:[%s7] sm:$0x1]
    %v310 = vlaneseq
    %v311 = vshrl.u32 %v310, 7
    %v312 = vsub.s32 0, %v311
    %v313 = vrot.slane %v308, %v312
    %v331 = vunpack.c.l.b16 %v292
    %v332 = vunpack.c.l.b16 %v293
    %v333 = vunpack.c.l.b16 %v294
    %v334 = vunpack.c.l.b16 %v295
    %v335 = vunpack.c.l.b16 %v296
    %v336 = vunpack.c.l.b16 %v297
    %v337 = vunpack.c.l.b16 %v298
    %v338 = vunpack.c.l.b16 %v299
    %v339 = vunpack.c.l.b16 %v300
    %v340 = vunpack.c.l.b16 %v301
    %v341 = vunpack.c.l.b16 %v302
    %v342 = vunpack.c.l.b16 %v303
    %v343 = vunpack.c.l.b16 %v304
    %v344 = vunpack.c.l.b16 %v305
    %v345 = vunpack.c.l.b16 %v306
    %v346 = vunpack.c.l.b16 %v307
    %v347 = vpack.c.b16 %v332, %v331
    %v348 = vpack.c.b16 %v334, %v333
    %v349 = vpack.c.b16 %v336, %v335
    %v350 = vpack.c.b16 %v338, %v337
    %v351 = vpack.c.b16 %v340, %v339
    %v352 = vpack.c.b16 %v342, %v341
    %v353 = vpack.c.b16 %v344, %v343
    %v354 = vpack.c.b16 %v346, %v345
    %363 = vmatprep.subr.bf16.mxu0 0
    %364 = vmatpush1.bf16.msra.mxu0 %v347
    %365 = vmatprep.subr.bf16.mxu0 0
    %366 = vmatpush1.bf16.msra.mxu0 %v348
    %367 = vmatprep.subr.bf16.mxu0 0
    %368 = vmatpush1.bf16.msra.mxu0 %v349
    %369 = vmatprep.subr.bf16.mxu0 0
    %370 = vmatpush1.bf16.msra.mxu0 %v350
    %371 = vmatprep.subr.bf16.mxu0 0
    %372 = vmatpush1.bf16.msra.mxu0 %v351
    %373 = vmatprep.subr.bf16.mxu0 0
    %374 = vmatpush1.bf16.msra.mxu0 %v352
    %375 = vmatprep.subr.bf16.mxu0 0
    %376 = vmatpush1.bf16.msra.mxu0 %v353
    %377 = vmatprep.subr.bf16.mxu0 0
    %378 = vmatpush1.bf16.msra.mxu0 %v354
    %379 = vmatprep.subr.bf16.mxu0 0
    %380 = vmatpush1.bf16.msra.mxu0 0
    %381 = vmatprep.subr.bf16.mxu0 0
    %382 = vmatpush1.bf16.msra.mxu0 0
    %383 = vmatprep.subr.bf16.mxu0 0
    %384 = vmatpush1.bf16.msra.mxu0 0
    %385 = vmatprep.subr.bf16.mxu0 0
    %386 = vmatpush1.bf16.msra.mxu0 0
    %387 = vmatprep.subr.bf16.mxu0 0
    %388 = vmatpush1.bf16.msra.mxu0 0
    %389 = vmatprep.subr.bf16.mxu0 0
    %390 = vmatpush1.bf16.msra.mxu0 0
    %391 = vmatprep.subr.bf16.mxu0 0
    %392 = vmatpush1.bf16.msra.mxu0 0
    %393 = vmatprep.subr.bf16.mxu0 0
    %394 = vmatpush1.bf16.msra.mxu0 0
    %395 = vmatprep.mubr.bf16.mxu0 0
    %396 = vmatmul.mubr.bf16.gmra.mrb[0].mxu0 %v291
    %v397 = vpop.f32.mrb[0].mxu0
    %v398 = vadd.f32 %v313, %v397
    %v399 = vpop.f32.mrb[0].mxu0
    %v400 = vpop.f32.mrb[0].mxu0
    %v401 = vpop.f32.mrb[0].mxu0
    %402 = vdwg.mxu0
    %v403 = vmax.f32 %v398, 0.0
    %405 = vset.pattern.permute.xlu0 0
    %406 = vperm.xlu0 %405, %v107
    %v407 = vpop.permute.xlu0 %406
    %v409 = vlaneseq
    %v410 = vshrl.u32 %v409, 7
    %v411 = vsub.s32 0, %v410
    %v412 = vrot.slane %v407, %v411
    %413 = vmatprep.subr.mxu0 0.0
    %414 = vmatpush1.xpose.msra.mxu0 %v403
    %415 = vmatprep.subr.mxu0 0.0
    %416 = vmatpush1.xpose.msra.mxu0 0.0
    %417 = vmatprep.subr.mxu0 0.0
    %418 = vmatpush1.xpose.msra.mxu0 0.0
    %419 = vmatprep.subr.mxu0 0.0
    %420 = vmatpush1.xpose.msra.mxu0 0.0
    %421 = vmatprep.subr.mxu0 0.0
    %422 = vmatpush1.xpose.msra.mxu0 0.0
    %423 = vmatprep.subr.mxu0 0.0
    %424 = vmatpush1.xpose.msra.mxu0 0.0
    %425 = vmatprep.subr.mxu0 0.0
    %426 = vmatpush1.xpose.msra.mxu0 0.0
    %427 = vmatprep.subr.mxu0 0.0
    %428 = vmatpush1.xpose.msra.mxu0 0.0
    %429 = vmatprep.subr.mxu0 0.0
    %430 = vmatpush1.xpose.msra.mxu0 0.0
    %431 = vmatprep.subr.mxu0 0.0
    %432 = vmatpush1.xpose.msra.mxu0 0.0
    %433 = vmatprep.subr.mxu0 0.0
    %434 = vmatpush1.xpose.msra.mxu0 0.0
    %435 = vmatprep.subr.mxu0 0.0
    %436 = vmatpush1.xpose.msra.mxu0 0.0
    %437 = vmatprep.subr.mxu0 0.0
    %438 = vmatpush1.xpose.msra.mxu0 0.0
    %439 = vmatprep.subr.mxu0 0.0
    %440 = vmatpush1.xpose.msra.mxu0 0.0
    %441 = vmatprep.subr.mxu0 0.0
    %442 = vmatpush1.xpose.msra.mxu0 0.0
    %443 = vmatprep.subr.mxu0 0.0
    %444 = vmatpush1.xpose.msra.mxu0 0.0
    %445 = vmatprep.subr.mxu0 0.0
    %446 = vmatpush1.xpose.msra.mxu0 0.0
    %447 = vmatprep.subr.mxu0 0.0
    %448 = vmatpush1.xpose.msra.mxu0 0.0
    %449 = vmatprep.subr.mxu0 0.0
    %450 = vmatpush1.xpose.msra.mxu0 0.0
    %451 = vmatprep.subr.mxu0 0.0
    %452 = vmatpush1.xpose.msra.mxu0 0.0
    %453 = vmatprep.subr.mxu0 0.0
    %454 = vmatpush1.xpose.msra.mxu0 0.0
    %455 = vmatprep.subr.mxu0 0.0
    %456 = vmatpush1.xpose.msra.mxu0 0.0
    %457 = vmatprep.subr.mxu0 0.0
    %458 = vmatpush1.xpose.msra.mxu0 0.0
    %459 = vmatprep.subr.mxu0 0.0
    %460 = vmatpush1.xpose.msra.mxu0 0.0
    %461 = vmatprep.subr.mxu0 0.0
    %462 = vmatpush1.xpose.msra.mxu0 0.0
    %463 = vmatprep.subr.mxu0 0.0
    %464 = vmatpush1.xpose.msra.mxu0 0.0
    %465 = vmatprep.subr.mxu0 0.0
    %466 = vmatpush1.xpose.msra.mxu0 0.0
    %467 = vmatprep.subr.mxu0 0.0
    %468 = vmatpush1.xpose.msra.mxu0 0.0
    %469 = vmatprep.subr.mxu0 0.0
    %470 = vmatpush1.xpose.msra.mxu0 0.0
    %471 = vmatprep.subr.mxu0 0.0
    %472 = vmatpush1.xpose.msra.mxu0 0.0
    %473 = vmatprep.subr.mxu0 0.0
    %474 = vmatpush1.xpose.msra.mxu0 0.0
    %475 = vmatprep.subr.mxu0 0.0
    %476 = vmatpush1.xpose.msra.mxu0 0.0
    %477 = vmatprep.mubr.f32.mxu0 0.0
    %478 = vmatmul.mubr.f32.gmra.mrb[0].mxu0 %v106
    %v479 = vpop.f32.mrb[0].mxu0
    %v480 = vadd.f32 %v412, %v479
    %v481 = vpop.f32.mrb[0].mxu0
    %482 = vdwg.mxu0
    %v483 = vand.u32 2147483647, %v480
    %v484 = vsub.f32 0.0, %v483
    %v485 = vmul.f32 %v484, 1.442695
    %v486 = vpow.pop %v485
    %vm487 = vcmp.ge.f32.partialorder %v480, 0.0
    %v488 = vadd.f32 %v486, 1.0
    %v489 = vrcp.pop %v488
    %v490 = vmul.f32 1.0, %v489
    %v491 = vmul.f32 %v486, %v489
    %v492 = vsel %vm487, %v490, %v491
    %vm493 = vcmask 57344
    %494 = vst.msk [vmem:[#allocation12] sm:$0x1] %vm493, %v492
    %v495 = vld [vmem:[#allocation6] sm:$0xff]
    %v496 = vpack.c.bf16 %v495, %v495
    %v497 = vld [vmem:[#allocation8] sm:$0xf]
    %v498 = vld [vmem:[#allocation8 + $0x4] sm:$0xf]
    %v499 = vld [vmem:[#allocation8 + $0x8] sm:$0xf]
    %v500 = vld [vmem:[#allocation8 + $0xc] sm:$0xf]
    %v501 = vld [vmem:[%s3] sm:$0x1]
    %v503 = vlaneseq
    %v504 = vshrl.u32 %v503, 7
    %v505 = vsub.s32 0, %v504
    %v506 = vrot.slane %v501, %v505
    %v512 = vunpack.c.l.b16 %v497
    %v513 = vunpack.c.l.b16 %v498
    %v514 = vunpack.c.l.b16 %v499
    %v515 = vunpack.c.l.b16 %v500
    %v516 = vpack.c.b16 %v513, %v512
    %v517 = vpack.c.b16 %v515, %v514
    %v521 = vsel %vm133, %v496, 0
    %523 = vmatprep.subr.bf16.mxu0 0
    %524 = vmatpush1.bf16.msra.mxu0 %v516
    %525 = vmatprep.subr.bf16.mxu0 0
    %526 = vmatpush1.bf16.msra.mxu0 %v517
    %527 = vmatprep.subr.bf16.mxu0 0
    %528 = vmatpush1.bf16.msra.mxu0 0
    %529 = vmatprep.subr.bf16.mxu0 0
    %530 = vmatpush1.bf16.msra.mxu0 0
    %531 = vmatprep.subr.bf16.mxu0 0
    %532 = vmatpush1.bf16.msra.mxu0 0
    %533 = vmatprep.subr.bf16.mxu0 0
    %534 = vmatpush1.bf16.msra.mxu0 0
    %535 = vmatprep.subr.bf16.mxu0 0
    %536 = vmatpush1.bf16.msra.mxu0 0
    %537 = vmatprep.subr.bf16.mxu0 0
    %538 = vmatpush1.bf16.msra.mxu0 0
    %539 = vmatprep.subr.bf16.mxu0 0
    %540 = vmatpush1.bf16.msra.mxu0 0
    %541 = vmatprep.subr.bf16.mxu0 0
    %542 = vmatpush1.bf16.msra.mxu0 0
    %543 = vmatprep.subr.bf16.mxu0 0
    %544 = vmatpush1.bf16.msra.mxu0 0
    %545 = vmatprep.subr.bf16.mxu0 0
    %546 = vmatpush1.bf16.msra.mxu0 0
    %547 = vmatprep.subr.bf16.mxu0 0
    %548 = vmatpush1.bf16.msra.mxu0 0
    %549 = vmatprep.subr.bf16.mxu0 0
    %550 = vmatpush1.bf16.msra.mxu0 0
    %551 = vmatprep.subr.bf16.mxu0 0
    %552 = vmatpush1.bf16.msra.mxu0 0
    %553 = vmatprep.subr.bf16.mxu0 0
    %554 = vmatpush1.bf16.msra.mxu0 0
    %555 = vmatprep.mubr.bf16.mxu0 0
    %556 = vmatmul.mubr.bf16.gmra.mrb[0].mxu0 %v521
    %v557 = vpop.f32.mrb[0].mxu0
    %v558 = vadd.f32 %v506, %v557
    %v559 = vpop.f32.mrb[0].mxu0
    %v560 = vpop.f32.mrb[0].mxu0
    %v561 = vpop.f32.mrb[0].mxu0
    %562 = vdwg.mxu0
    %v563 = vmax.f32 %v558, 0.0
    %v564 = vpack.c.bf16 %v563, %v563
    %v565 = vld [vmem:[#allocation9] sm:$0xf]
    %v566 = vld [vmem:[#allocation9 + $0x4] sm:$0xf]
    %v567 = vld [vmem:[#allocation9 + $0x8] sm:$0xf]
    %v568 = vld [vmem:[#allocation9 + $0xc] sm:$0xf]
    %v569 = vld [vmem:[#allocation9 + $0x10] sm:$0xf]
    %v570 = vld [vmem:[#allocation9 + $0x14] sm:$0xf]
    %v571 = vld [vmem:[#allocation9 + $0x18] sm:$0xf]
    %v572 = vld [vmem:[#allocation9 + $0x1c] sm:$0xf]
    %v573 = vld [vmem:[#allocation9 + $0x20] sm:$0xf]
    %v574 = vld [vmem:[#allocation9 + $0x24] sm:$0xf]
    %v575 = vld [vmem:[#allocation9 + $0x28] sm:$0xf]
    %v576 = vld [vmem:[#allocation9 + $0x2c] sm:$0xf]
    %v577 = vld [vmem:[#allocation9 + $0x30] sm:$0xf]
    %v578 = vld [vmem:[#allocation9 + $0x34] sm:$0xf]
    %v579 = vld [vmem:[#allocation9 + $0x38] sm:$0xf]
    %v580 = vld [vmem:[#allocation9 + $0x3c] sm:$0xf]
    %v581 = vld [vmem:[%s5] sm:$0x1]
    %v583 = vlaneseq
    %v584 = vshrl.u32 %v583, 7
    %v585 = vsub.s32 0, %v584
    %v586 = vrot.slane %v581, %v585
    %v604 = vunpack.c.l.b16 %v565
    %v605 = vunpack.c.l.b16 %v566
    %v606 = vunpack.c.l.b16 %v567
    %v607 = vunpack.c.l.b16 %v568
    %v608 = vunpack.c.l.b16 %v569
    %v609 = vunpack.c.l.b16 %v570
    %v610 = vunpack.c.l.b16 %v571
    %v611 = vunpack.c.l.b16 %v572
    %v612 = vunpack.c.l.b16 %v573
    %v613 = vunpack.c.l.b16 %v574
    %v614 = vunpack.c.l.b16 %v575
    %v615 = vunpack.c.l.b16 %v576
    %v616 = vunpack.c.l.b16 %v577
    %v617 = vunpack.c.l.b16 %v578
    %v618 = vunpack.c.l.b16 %v579
    %v619 = vunpack.c.l.b16 %v580
    %v620 = vpack.c.b16 %v605, %v604
    %v621 = vpack.c.b16 %v607, %v606
    %v622 = vpack.c.b16 %v609, %v608
    %v623 = vpack.c.b16 %v611, %v610
    %v624 = vpack.c.b16 %v613, %v612
    %v625 = vpack.c.b16 %v615, %v614
    %v626 = vpack.c.b16 %v617, %v616
    %v627 = vpack.c.b16 %v619, %v618
    %636 = vmatprep.subr.bf16.mxu0 0
    %637 = vmatpush1.bf16.msra.mxu0 %v620
    %638 = vmatprep.subr.bf16.mxu0 0
    %639 = vmatpush1.bf16.msra.mxu0 %v621
    %640 = vmatprep.subr.bf16.mxu0 0
    %641 = vmatpush1.bf16.msra.mxu0 %v622
    %642 = vmatprep.subr.bf16.mxu0 0
    %643 = vmatpush1.bf16.msra.mxu0 %v623
    %644 = vmatprep.subr.bf16.mxu0 0
    %645 = vmatpush1.bf16.msra.mxu0 %v624
    %646 = vmatprep.subr.bf16.mxu0 0
    %647 = vmatpush1.bf16.msra.mxu0 %v625
    %648 = vmatprep.subr.bf16.mxu0 0
    %649 = vmatpush1.bf16.msra.mxu0 %v626
    %650 = vmatprep.subr.bf16.mxu0 0
    %651 = vmatpush1.bf16.msra.mxu0 %v627
    %652 = vmatprep.subr.bf16.mxu0 0
    %653 = vmatpush1.bf16.msra.mxu0 0
    %654 = vmatprep.subr.bf16.mxu0 0
    %655 = vmatpush1.bf16.msra.mxu0 0
    %656 = vmatprep.subr.bf16.mxu0 0
    %657 = vmatpush1.bf16.msra.mxu0 0
    %658 = vmatprep.subr.bf16.mxu0 0
    %659 = vmatpush1.bf16.msra.mxu0 0
    %660 = vmatprep.subr.bf16.mxu0 0
    %661 = vmatpush1.bf16.msra.mxu0 0
    %662 = vmatprep.subr.bf16.mxu0 0
    %663 = vmatpush1.bf16.msra.mxu0 0
    %664 = vmatprep.subr.bf16.mxu0 0
    %665 = vmatpush1.bf16.msra.mxu0 0
    %666 = vmatprep.subr.bf16.mxu0 0
    %667 = vmatpush1.bf16.msra.mxu0 0
    %668 = vmatprep.mubr.bf16.mxu0 0
    %669 = vmatmul.mubr.bf16.gmra.mrb[0].mxu0 %v564
    %v670 = vpop.f32.mrb[0].mxu0
    %v671 = vadd.f32 %v586, %v670
    %v672 = vpop.f32.mrb[0].mxu0
    %v673 = vpop.f32.mrb[0].mxu0
    %v674 = vpop.f32.mrb[0].mxu0
    %675 = vdwg.mxu0
    %v676 = vmax.f32 %v671, 0.0
    %v677 = vpack.c.bf16 %v676, %v676
    %v678 = vld [vmem:[#allocation11] sm:$0xf]
    %v679 = vld [vmem:[#allocation11 + $0x4] sm:$0xf]
    %v680 = vld [vmem:[#allocation11 + $0x8] sm:$0xf]
    %v681 = vld [vmem:[#allocation11 + $0xc] sm:$0xf]
    %v682 = vld [vmem:[#allocation11 + $0x10] sm:$0xf]
    %v683 = vld [vmem:[#allocation11 + $0x14] sm:$0xf]
    %v684 = vld [vmem:[#allocation11 + $0x18] sm:$0xf]
    %v685 = vld [vmem:[#allocation11 + $0x1c] sm:$0xf]
    %v686 = vld [vmem:[#allocation11 + $0x20] sm:$0xf]
    %v687 = vld [vmem:[#allocation11 + $0x24] sm:$0xf]
    %v688 = vld [vmem:[#allocation11 + $0x28] sm:$0xf]
    %v689 = vld [vmem:[#allocation11 + $0x2c] sm:$0xf]
    %v690 = vld [vmem:[#allocation11 + $0x30] sm:$0xf]
    %v691 = vld [vmem:[#allocation11 + $0x34] sm:$0xf]
    %v692 = vld [vmem:[#allocation11 + $0x38] sm:$0xf]
    %v693 = vld [vmem:[#allocation11 + $0x3c] sm:$0xf]
    %v694 = vld [vmem:[%s7] sm:$0x1]
    %v696 = vlaneseq
    %v697 = vshrl.u32 %v696, 7
    %v698 = vsub.s32 0, %v697
    %v699 = vrot.slane %v694, %v698
    %v717 = vunpack.c.l.b16 %v678
    %v718 = vunpack.c.l.b16 %v679
    %v719 = vunpack.c.l.b16 %v680
    %v720 = vunpack.c.l.b16 %v681
    %v721 = vunpack.c.l.b16 %v682
    %v722 = vunpack.c.l.b16 %v683
    %v723 = vunpack.c.l.b16 %v684
    %v724 = vunpack.c.l.b16 %v685
    %v725 = vunpack.c.l.b16 %v686
    %v726 = vunpack.c.l.b16 %v687
    %v727 = vunpack.c.l.b16 %v688
    %v728 = vunpack.c.l.b16 %v689
    %v729 = vunpack.c.l.b16 %v690
    %v730 = vunpack.c.l.b16 %v691
    %v731 = vunpack.c.l.b16 %v692
    %v732 = vunpack.c.l.b16 %v693
    %v733 = vpack.c.b16 %v718, %v717
    %v734 = vpack.c.b16 %v720, %v719
    %v735 = vpack.c.b16 %v722, %v721
    %v736 = vpack.c.b16 %v724, %v723
    %v737 = vpack.c.b16 %v726, %v725
    %v738 = vpack.c.b16 %v728, %v727
    %v739 = vpack.c.b16 %v730, %v729
    %v740 = vpack.c.b16 %v732, %v731
    %749 = vmatprep.subr.bf16.mxu0 0
    %750 = vmatpush1.bf16.msra.mxu0 %v733
    %751 = vmatprep.subr.bf16.mxu0 0
    %752 = vmatpush1.bf16.msra.mxu0 %v734
    %753 = vmatprep.subr.bf16.mxu0 0
    %754 = vmatpush1.bf16.msra.mxu0 %v735
    %755 = vmatprep.subr.bf16.mxu0 0
    %756 = vmatpush1.bf16.msra.mxu0 %v736
    %757 = vmatprep.subr.bf16.mxu0 0
    %758 = vmatpush1.bf16.msra.mxu0 %v737
    %759 = vmatprep.subr.bf16.mxu0 0
    %760 = vmatpush1.bf16.msra.mxu0 %v738
    %761 = vmatprep.subr.bf16.mxu0 0
    %762 = vmatpush1.bf16.msra.mxu0 %v739
    %763 = vmatprep.subr.bf16.mxu0 0
    %764 = vmatpush1.bf16.msra.mxu0 %v740
    %765 = vmatprep.subr.bf16.mxu0 0
    %766 = vmatpush1.bf16.msra.mxu0 0
    %767 = vmatprep.subr.bf16.mxu0 0
    %768 = vmatpush1.bf16.msra.mxu0 0
    %769 = vmatprep.subr.bf16.mxu0 0
    %770 = vmatpush1.bf16.msra.mxu0 0
    %771 = vmatprep.subr.bf16.mxu0 0
    %772 = vmatpush1.bf16.msra.mxu0 0
    %773 = vmatprep.subr.bf16.mxu0 0
    %774 = vmatpush1.bf16.msra.mxu0 0
    %775 = vmatprep.subr.bf16.mxu0 0
    %776 = vmatpush1.bf16.msra.mxu0 0
    %777 = vmatprep.subr.bf16.mxu0 0
    %778 = vmatpush1.bf16.msra.mxu0 0
    %779 = vmatprep.subr.bf16.mxu0 0
    %780 = vmatpush1.bf16.msra.mxu0 0
    %781 = vmatprep.mubr.bf16.mxu0 0
    %782 = vmatmul.mubr.bf16.gmra.mrb[0].mxu0 %v677
    %v783 = vpop.f32.mrb[0].mxu0
    %v784 = vadd.f32 %v699, %v783
    %v785 = vpop.f32.mrb[0].mxu0
    %v786 = vpop.f32.mrb[0].mxu0
    %v787 = vpop.f32.mrb[0].mxu0
    %788 = vdwg.mxu0
    %v789 = vmax.f32 %v784, 0.0
    %790 = vmatprep.subr.mxu0 0.0
    %791 = vmatpush1.xpose.msra.mxu0 %v789
    %792 = vmatprep.subr.mxu0 0.0
    %793 = vmatpush1.xpose.msra.mxu0 0.0
    %794 = vmatprep.subr.mxu0 0.0
    %795 = vmatpush1.xpose.msra.mxu0 0.0
    %796 = vmatprep.subr.mxu0 0.0
    %797 = vmatpush1.xpose.msra.mxu0 0.0
    %798 = vmatprep.subr.mxu0 0.0
    %799 = vmatpush1.xpose.msra.mxu0 0.0
    %800 = vmatprep.subr.mxu0 0.0
    %801 = vmatpush1.xpose.msra.mxu0 0.0
    %802 = vmatprep.subr.mxu0 0.0
    %803 = vmatpush1.xpose.msra.mxu0 0.0
    %804 = vmatprep.subr.mxu0 0.0
    %805 = vmatpush1.xpose.msra.mxu0 0.0
    %806 = vmatprep.subr.mxu0 0.0
    %807 = vmatpush1.xpose.msra.mxu0 0.0
    %808 = vmatprep.subr.mxu0 0.0
    %809 = vmatpush1.xpose.msra.mxu0 0.0
    %810 = vmatprep.subr.mxu0 0.0
    %811 = vmatpush1.xpose.msra.mxu0 0.0
    %812 = vmatprep.subr.mxu0 0.0
    %813 = vmatpush1.xpose.msra.mxu0 0.0
    %814 = vmatprep.subr.mxu0 0.0
    %815 = vmatpush1.xpose.msra.mxu0 0.0
    %816 = vmatprep.subr.mxu0 0.0
    %817 = vmatpush1.xpose.msra.mxu0 0.0
    %818 = vmatprep.subr.mxu0 0.0
    %819 = vmatpush1.xpose.msra.mxu0 0.0
    %820 = vmatprep.subr.mxu0 0.0
    %821 = vmatpush1.xpose.msra.mxu0 0.0
    %822 = vmatprep.subr.mxu0 0.0
    %823 = vmatpush1.xpose.msra.mxu0 0.0
    %824 = vmatprep.subr.mxu0 0.0
    %825 = vmatpush1.xpose.msra.mxu0 0.0
    %826 = vmatprep.subr.mxu0 0.0
    %827 = vmatpush1.xpose.msra.mxu0 0.0
    %828 = vmatprep.subr.mxu0 0.0
    %829 = vmatpush1.xpose.msra.mxu0 0.0
    %830 = vmatprep.subr.mxu0 0.0
    %831 = vmatpush1.xpose.msra.mxu0 0.0
    %832 = vmatprep.subr.mxu0 0.0
    %833 = vmatpush1.xpose.msra.mxu0 0.0
    %834 = vmatprep.subr.mxu0 0.0
    %835 = vmatpush1.xpose.msra.mxu0 0.0
    %836 = vmatprep.subr.mxu0 0.0
    %837 = vmatpush1.xpose.msra.mxu0 0.0
    %838 = vmatprep.subr.mxu0 0.0
    %839 = vmatpush1.xpose.msra.mxu0 0.0
    %840 = vmatprep.subr.mxu0 0.0
    %841 = vmatpush1.xpose.msra.mxu0 0.0
    %842 = vmatprep.subr.mxu0 0.0
    %843 = vmatpush1.xpose.msra.mxu0 0.0
    %844 = vmatprep.subr.mxu0 0.0
    %845 = vmatpush1.xpose.msra.mxu0 0.0
    %846 = vmatprep.subr.mxu0 0.0
    %847 = vmatpush1.xpose.msra.mxu0 0.0
    %848 = vmatprep.subr.mxu0 0.0
    %849 = vmatpush1.xpose.msra.mxu0 0.0
    %850 = vmatprep.subr.mxu0 0.0
    %851 = vmatpush1.xpose.msra.mxu0 0.0
    %852 = vmatprep.subr.mxu0 0.0
    %853 = vmatpush1.xpose.msra.mxu0 0.0
    %854 = vmatprep.mubr.f32.mxu0 0.0
    %855 = vmatmul.mubr.f32.gmra.mrb[0].mxu0 %v106
    %v856 = vpop.f32.mrb[0].mxu0
    %v857 = vadd.f32 %v412, %v856
    %v858 = vpop.f32.mrb[0].mxu0
    %859 = vdwg.mxu0
    %v860 = vand.u32 2147483647, %v857
    %v861 = vsub.f32 0.0, %v860
    %v862 = vmul.f32 %v861, 1.442695
    %v863 = vpow.pop %v862
    %vm864 = vcmp.ge.f32.partialorder %v857, 0.0
    %v865 = vadd.f32 %v863, 1.0
    %v866 = vrcp.pop %v865
    %v867 = vmul.f32 1.0, %v866
    %v868 = vmul.f32 %v863, %v866
    %v869 = vsel %vm864, %v867, %v868
    %870 = vst.msk [vmem:[#allocation13] sm:$0x1] %vm493, %v869
    // Predicated region
    $region62: #{tpu_custom_call.1} parent=1 // pred_check
      _
    $region63: #{tpu_custom_call.1} parent=1 // pred_check_branch
      %872 = sbr.rel (0) target = $region65
    $region64: #{tpu_custom_call.1} parent=1 // pred_region
      %s874 = ssub.s32 16, 16
      %875 = vsyncadd [#allocation5], %s874
      %s877 = sshll.u32 [#allocation12], 4
      %s878 = int_to_ptr.vmem [resolvable:$true] %s877
      %880 = dma.vmem_to_hbm [thread:$0]  %s878, 16, %s10, [#allocation5]
    $region65: #{tpu_custom_call.1} parent=1 // pred_fallthru
      _
    // Predicated region
    $region66: #{tpu_custom_call.1} parent=1 // pred_check
      _
    $region67: #{tpu_custom_call.1} parent=1 // pred_check_branch
      %882 = sbr.rel (0) target = $region69
    $region68: #{tpu_custom_call.1} parent=1 // pred_region
      %s884 = ssub.s32 16, 16
      %885 = vsyncadd [#allocation14], %s884
      %s887 = sshll.u32 [#allocation13], 4
      %s888 = int_to_ptr.vmem [resolvable:$true] %s887
      %890 = dma.vmem_to_hbm [thread:$0]  %s888, 16, %s11, [#allocation14]
    $region69: #{tpu_custom_call.1} parent=1 // pred_fallthru
      _
    // Predicated region
    $region70: #{tpu_custom_call.1} parent=1 // pred_check
      _
    $region71: #{tpu_custom_call.1} parent=1 // pred_check_branch
      %892 = sbr.rel (0) target = $region73
    $region72: #{tpu_custom_call.1} parent=1 // pred_region
      %893 = dma.done [#allocation5], 16
    $region73: #{tpu_custom_call.1} parent=1 // pred_fallthru
      _
    // Predicated region
    $region74: #{tpu_custom_call.1} parent=1 // pred_check
      _
    $region75: #{tpu_custom_call.1} parent=1 // pred_check_branch
      %895 = sbr.rel (0) target = $region77
    $region76: #{tpu_custom_call.1} parent=1 // pred_region
      %896 = dma.done [#allocation14], 16
    $region77: #{tpu_custom_call.1} parent=1 // pred_fallthru
      _
    %897 = vsyncpa [#allocation4], 1
    %898 = vsyncpa [#allocation7], 1
    %899 = vsyncpa [#allocation10], 1
    %900 = vsyncpa [#allocation5], 1
    %901 = vsyncpa [#allocation14], 1

// kernel: tpu_custom_call.1
$region0: #{tpu_custom_call.1}
  #allocation0 [shape = 'u32[]', space=smem, size = 0x4, offset = 0x4, fixed_abs, tag = 'smem constant byte address 0x4 - core index']
  #allocation1 [shape = 'u32[144,128]{1,0:T(1,128)}', space=vmem, size = 0x12000, scoped, tag = 'internal scratch']
  #allocation2 [shape = 'f32[1,1]{1,0:T(1,128)S(1)}', space=vmem, size = 0x200, scoped, tag = 'scoped memory for tpu_custom_call.1']
  %s0 = inlined_call_operand.hbm [shape: f32[8,32], index: 0, kind: input, shape index: {}]
  %s1 = inlined_call_operand.hbm [shape: f32[8,32], index: 1, kind: input, shape index: {}]
  %s2 = inlined_call_operand.hbm [shape: bf16[32,128], index: 2, kind: input, shape index: {}]
  %s3 = inlined_call_operand.vmem [shape: f32[1,128], index: 3, kind: input, shape index: {}]
  %s4 = inlined_call_operand.hbm [shape: bf16[128,128], index: 4, kind: input, shape index: {}]
  %s5 = inlined_call_operand.vmem [shape: f32[1,128], index: 5, kind: input, shape index: {}]
  %s6 = inlined_call_operand.hbm [shape: bf16[128,128], index: 6, kind: input, shape index: {}]
  %s7 = inlined_call_operand.vmem [shape: f32[1,128], index: 7, kind: input, shape index: {}]
  %s8 = inlined_call_operand.vmem [shape: f32[1,128], index: 8, kind: input, shape index: {}]
  %s9 = inlined_call_operand.<no memory space> [shape: f32[1,1], index: 9, kind: input, shape index: {}]
  %s10 = inlined_call_operand.hbm [shape: f32[1,8], index: 10, kind: output, shape index: {0}]
  %s11 = inlined_call_operand.hbm [shape: f32[1,8], index: 11, kind: output, shape index: {1}]
  %12 = xla_tuple %s10, %s11
  %s13 = sld [smem:[#allocation0]]
  $region78: #{tpu_custom_call.1} parent=0
    _
  %s15 = ssub.s32 1, %s13
  %s16 = scalar_select 0, %s15, %s13
  %v17 = vstv %s9
  %18 = vst [vmem:[#allocation2] sm:$0x1] %v17
  $region1: #{tpu_custom_call.1} parent=0
    #allocation3 [shape = 'u8[4096]{0}', space=vmem, size = 0x1000, scoped, tag = 'input window, operand 0, single buffered']
    #allocation4 [shape = 's32[1]{0}', space=sflag, size = 0x4, scoped, tag = 'scoped memory for tpu_custom_call.1']
    #allocation5 [shape = 's32[1]{0}', space=sflag, size = 0x4, scoped, tag = 'scoped memory for tpu_custom_call.1']
    #allocation6 [shape = 'u8[4096]{0}', space=vmem, size = 0x1000, scoped, tag = 'input window, operand 1, single buffered']
    #allocation7 [shape = 's32[1]{0}', space=sflag, size = 0x4, scoped, tag = 'scoped memory for tpu_custom_call.1']
    #allocation8 [shape = 'u8[8192]{0}', space=vmem, size = 0x2000, scoped, tag = 'input window, operand 2, single buffered']
    #allocation9 [shape = 'u8[32768]{0}', space=vmem, size = 0x8000, scoped, tag = 'input window, operand 4, single buffered']
    #allocation10 [shape = 's32[1]{0}', space=sflag, size = 0x4, scoped, tag = 'scoped memory for tpu_custom_call.1']
    #allocation11 [shape = 'u8[32768]{0}', space=vmem, size = 0x8000, scoped, tag = 'input window, operand 6, single buffered']
    #allocation12 [shape = 'u8[512]{0}', space=vmem, size = 0x400, scoped, tag = 'output window, operand 0, single buffered']
    #allocation13 [shape = 'u8[512]{0}', space=vmem, size = 0x400, scoped, tag = 'output window, operand 1, single buffered']
    #allocation14 [shape = 's32[1]{0}', space=sflag, size = 0x4, scoped, tag = 'scoped memory for tpu_custom_call.1']
    %19 = vsyncpa [#allocation4], 0
    %20 = vsyncpa [#allocation7], 0
    %21 = vsyncpa [#allocation10], 0
    %22 = vsyncpa [#allocation5], 0
    %23 = vsyncpa [#allocation14], 0
    // Predicated region
    $region2: #{tpu_custom_call.1} parent=1 // pred_check
      _
    $region3: #{tpu_custom_call.1} parent=1 // pred_check_branch
      %25 = sbr.rel (0) target = $region5
    $region4: #{tpu_custom_call.1} parent=1 // pred_region
      %s27 = ssub.s32 128, 128
      %28 = vsyncadd [#allocation4], %s27
      %s30 = sshll.u32 [#allocation3], 4
      %s31 = int_to_ptr.vmem [resolvable:$true] %s30
      %33 = dma.hbm_to_vmem [thread:$0]  %s0, 128, %s31, [#allocation4]
    $region5: #{tpu_custom_call.1} parent=1 // pred_fallthru
      _
    // Predicated region
    $region6: #{tpu_custom_call.1} parent=1 // pred_check
      _
    $region7: #{tpu_custom_call.1} parent=1 // pred_check_branch
      %35 = sbr.rel (0) target = $region9
    $region8: #{tpu_custom_call.1} parent=1 // pred_region
      %s37 = ssub.s32 128, 128
      %38 = vsyncadd [#allocation7], %s37
      %s40 = sshll.u32 [#allocation6], 4
      %s41 = int_to_ptr.vmem [resolvable:$true] %s40
      %43 = dma.hbm_to_vmem [thread:$0]  %s1, 128, %s41, [#allocation7]
    $region9: #{tpu_custom_call.1} parent=1 // pred_fallthru
      _
    // Predicated region
    $region10: #{tpu_custom_call.1} parent=1 // pred_check
      _
    $region11: #{tpu_custom_call.1} parent=1 // pred_check_branch
      %45 = sbr.rel (0) target = $region13
    $region12: #{tpu_custom_call.1} parent=1 // pred_region
      %s47 = ssub.s32 256, 256
      %48 = vsyncadd [#allocation7], %s47
      %s49 = sshll.u32 [#allocation8], 4
      %s50 = int_to_ptr.vmem [resolvable:$true] %s49
      %55 = dma.hbm_to_vmem [thread:$0]  %s2, 256, %s50, [#allocation7], 64, 64, 4
    $region13: #{tpu_custom_call.1} parent=1 // pred_fallthru
      _
    // Predicated region
    $region14: #{tpu_custom_call.1} parent=1 // pred_check
      _
    $region15: #{tpu_custom_call.1} parent=1 // pred_check_branch
      %57 = sbr.rel (0) target = $region17
    $region16: #{tpu_custom_call.1} parent=1 // pred_region
      _
    $region17: #{tpu_custom_call.1} parent=1 // pred_fallthru
      _
    // Predicated region
    $region18: #{tpu_custom_call.1} parent=1 // pred_check
      _
    $region19: #{tpu_custom_call.1} parent=1 // pred_check_branch
      %59 = sbr.rel (0) target = $region21
    $region20: #{tpu_custom_call.1} parent=1 // pred_region
      %s61 = ssub.s32 1024, 1024
      %62 = vsyncadd [#allocation10], %s61
      %s63 = sshll.u32 [#allocation9], 4
      %s64 = int_to_ptr.vmem [resolvable:$true] %s63
      %69 = dma.hbm_to_vmem [thread:$0]  %s4, 1024, %s64, [#allocation10], 64, 64, 4
    $region21: #{tpu_custom_call.1} parent=1 // pred_fallthru
      _
    // Predicated region
    $region22: #{tpu_custom_call.1} parent=1 // pred_check
      _
    $region23: #{tpu_custom_call.1} parent=1 // pred_check_branch
      %71 = sbr.rel (0) target = $region25
    $region24: #{tpu_custom_call.1} parent=1 // pred_region
      _
    $region25: #{tpu_custom_call.1} parent=1 // pred_fallthru
      _
    // Predicated region
    $region26: #{tpu_custom_call.1} parent=1 // pred_check
      _
    $region27: #{tpu_custom_call.1} parent=1 // pred_check_branch
      %73 = sbr.rel (0) target = $region29
    $region28: #{tpu_custom_call.1} parent=1 // pred_region
      %s75 = ssub.s32 1024, 1024
      %76 = vsyncadd [#allocation10], %s75
      %s77 = sshll.u32 [#allocation11], 4
      %s78 = int_to_ptr.vmem [resolvable:$true] %s77
      %83 = dma.hbm_to_vmem [thread:$0]  %s6, 1024, %s78, [#allocation10], 64, 64, 4
    $region29: #{tpu_custom_call.1} parent=1 // pred_fallthru
      _
    // Predicated region
    $region30: #{tpu_custom_call.1} parent=1 // pred_check
      _
    $region31: #{tpu_custom_call.1} parent=1 // pred_check_branch
      %85 = sbr.rel (0) target = $region33
    $region32: #{tpu_custom_call.1} parent=1 // pred_region
      _
    $region33: #{tpu_custom_call.1} parent=1 // pred_fallthru
      _
    // Predicated region
    $region34: #{tpu_custom_call.1} parent=1 // pred_check
      _
    $region35: #{tpu_custom_call.1} parent=1 // pred_check_branch
      %87 = sbr.rel (0) target = $region37
    $region36: #{tpu_custom_call.1} parent=1 // pred_region
      _
    $region37: #{tpu_custom_call.1} parent=1 // pred_fallthru
      _
    // Predicated region
    $region38: #{tpu_custom_call.1} parent=1 // pred_check
      _
    $region39: #{tpu_custom_call.1} parent=1 // pred_check_branch
      %89 = sbr.rel (0) target = $region41
    $region40: #{tpu_custom_call.1} parent=1 // pred_region
      _
    $region41: #{tpu_custom_call.1} parent=1 // pred_fallthru
      _
    // Predicated region
    $region42: #{tpu_custom_call.1} parent=1 // pred_check
      _
    $region43: #{tpu_custom_call.1} parent=1 // pred_check_branch
      %91 = sbr.rel (0) target = $region45
    $region44: #{tpu_custom_call.1} parent=1 // pred_region
      %92 = dma.done [#allocation4], 128
    $region45: #{tpu_custom_call.1} parent=1 // pred_fallthru
      _
    // Predicated region
    $region46: #{tpu_custom_call.1} parent=1 // pred_check
      _
    $region47: #{tpu_custom_call.1} parent=1 // pred_check_branch
      %94 = sbr.rel (0) target = $region49
    $region48: #{tpu_custom_call.1} parent=1 // pred_region
      %95 = dma.done [#allocation7], 128
    $region49: #{tpu_custom_call.1} parent=1 // pred_fallthru
      _
    // Predicated region
    $region50: #{tpu_custom_call.1} parent=1 // pred_check
      _
    $region51: #{tpu_custom_call.1} parent=1 // pred_check_branch
      %97 = sbr.rel (0) target = $region53
    $region52: #{tpu_custom_call.1} parent=1 // pred_region
      %98 = dma.done [#allocation7], 256
    $region53: #{tpu_custom_call.1} parent=1 // pred_fallthru
      _
    // Predicated region
    $region54: #{tpu_custom_call.1} parent=1 // pred_check
      _
    $region55: #{tpu_custom_call.1} parent=1 // pred_check_branch
      %100 = sbr.rel (0) target = $region57
    $region56: #{tpu_custom_call.1} parent=1 // pred_region
      %101 = dma.done [#allocation10], 1024
    $region57: #{tpu_custom_call.1} parent=1 // pred_fallthru
      _
    // Predicated region
    $region58: #{tpu_custom_call.1} parent=1 // pred_check
      _
    $region59: #{tpu_custom_call.1} parent=1 // pred_check_branch
      %103 = sbr.rel (0) target = $region61
    $region60: #{tpu_custom_call.1} parent=1 // pred_region
      %104 = dma.done [#allocation10], 1024
    $region61: #{tpu_custom_call.1} parent=1 // pred_fallthru
      _
    %v106 = vld [vmem:[%s8] sm:$0x1]
    %v107 = vld [vmem:[#allocation2] sm:$0x1]
    %v108 = vld [vmem:[#allocation3] sm:$0xff]
    %v109 = vpack.c.bf16 %v108, %v108
    %v110 = vld [vmem:[#allocation8] sm:$0xf]
    %v111 = vld [vmem:[#allocation8 + $0x4] sm:$0xf]
    %v112 = vld [vmem:[#allocation8 + $0x8] sm:$0xf]
    %v113 = vld [vmem:[#allocation8 + $0xc] sm:$0xf]
    %v114 = vld [vmem:[%s3] sm:$0x1]
    %v116 = vlaneseq
    %v117 = vshrl.u32 %v116, 7
    %v118 = vsub.s32 0, %v117
    %v119 = vrot.slane %v114, %v118
    %v125 = vunpack.c.l.b16 %v110
    %v126 = vunpack.c.l.b16 %v111
    %v127 = vunpack.c.l.b16 %v112
    %v128 = vunpack.c.l.b16 %v113
    %v129 = vpack.c.b16 %v126, %v125
    %v130 = vpack.c.b16 %v128, %v127
    %vm133 = vcmask 261120
    %v135 = vsel %vm133, %v109, 0
    %137 = vmatprep.subr.bf16.mxu0 0
    %138 = vmatpush1.bf16.msra.mxu0 %v129
    %139 = vmatprep.subr.bf16.mxu0 0
    %140 = vmatpush1.bf16.msra.mxu0 %v130
    %141 = vmatprep.subr.bf16.mxu0 0
    %142 = vmatpush1.bf16.msra.mxu0 0
    %143 = vmatprep.subr.bf16.mxu0 0
    %144 = vmatpush1.bf16.msra.mxu0 0
    %145 = vmatprep.subr.bf16.mxu0 0
    %146 = vmatpush1.bf16.msra.mxu0 0
    %147 = vmatprep.subr.bf16.mxu0 0
    %148 = vmatpush1.bf16.msra.mxu0 0
    %149 = vmatprep.subr.bf16.mxu0 0
    %150 = vmatpush1.bf16.msra.mxu0 0
    %151 = vmatprep.subr.bf16.mxu0 0
    %152 = vmatpush1.bf16.msra.mxu0 0
    %153 = vmatprep.subr.bf16.mxu0 0
    %154 = vmatpush1.bf16.msra.mxu0 0
    %155 = vmatprep.subr.bf16.mxu0 0
    %156 = vmatpush1.bf16.msra.mxu0 0
    %157 = vmatprep.subr.bf16.mxu0 0
    %158 = vmatpush1.bf16.msra.mxu0 0
    %159 = vmatprep.subr.bf16.mxu0 0
    %160 = vmatpush1.bf16.msra.mxu0 0
    %161 = vmatprep.subr.bf16.mxu0 0
    %162 = vmatpush1.bf16.msra.mxu0 0
    %163 = vmatprep.subr.bf16.mxu0 0
    %164 = vmatpush1.bf16.msra.mxu0 0
    %165 = vmatprep.subr.bf16.mxu0 0
    %166 = vmatpush1.bf16.msra.mxu0 0
    %167 = vmatprep.subr.bf16.mxu0 0
    %168 = vmatpush1.bf16.msra.mxu0 0
    %169 = vmatprep.mubr.bf16.mxu0 0
    %170 = vmatmul.mubr.bf16.gmra.mrb[0].mxu0 %v135
    %v171 = vpop.f32.mrb[0].mxu0
    %v172 = vadd.f32 %v119, %v171
    %v173 = vpop.f32.mrb[0].mxu0
    %v174 = vpop.f32.mrb[0].mxu0
    %v175 = vpop.f32.mrb[0].mxu0
    %176 = vdwg.mxu0
    %v177 = vmax.f32 %v172, 0.0
    %v178 = vpack.c.bf16 %v177, %v177
    %v179 = vld [vmem:[#allocation9] sm:$0xf]
    %v180 = vld [vmem:[#allocation9 + $0x4] sm:$0xf]
    %v181 = vld [vmem:[#allocation9 + $0x8] sm:$0xf]
    %v182 = vld [vmem:[#allocation9 + $0xc] sm:$0xf]
    %v183 = vld [vmem:[#allocation9 + $0x10] sm:$0xf]
    %v184 = vld [vmem:[#allocation9 + $0x14] sm:$0xf]
    %v185 = vld [vmem:[#allocation9 + $0x18] sm:$0xf]
    %v186 = vld [vmem:[#allocation9 + $0x1c] sm:$0xf]
    %v187 = vld [vmem:[#allocation9 + $0x20] sm:$0xf]
    %v188 = vld [vmem:[#allocation9 + $0x24] sm:$0xf]
    %v189 = vld [vmem:[#allocation9 + $0x28] sm:$0xf]
    %v190 = vld [vmem:[#allocation9 + $0x2c] sm:$0xf]
    %v191 = vld [vmem:[#allocation9 + $0x30] sm:$0xf]
    %v192 = vld [vmem:[#allocation9 + $0x34] sm:$0xf]
    %v193 = vld [vmem:[#allocation9 + $0x38] sm:$0xf]
    %v194 = vld [vmem:[#allocation9 + $0x3c] sm:$0xf]
    %v195 = vld [vmem:[%s5] sm:$0x1]
    %v197 = vlaneseq
    %v198 = vshrl.u32 %v197, 7
    %v199 = vsub.s32 0, %v198
    %v200 = vrot.slane %v195, %v199
    %v218 = vunpack.c.l.b16 %v179
    %v219 = vunpack.c.l.b16 %v180
    %v220 = vunpack.c.l.b16 %v181
    %v221 = vunpack.c.l.b16 %v182
    %v222 = vunpack.c.l.b16 %v183
    %v223 = vunpack.c.l.b16 %v184
    %v224 = vunpack.c.l.b16 %v185
    %v225 = vunpack.c.l.b16 %v186
    %v226 = vunpack.c.l.b16 %v187
    %v227 = vunpack.c.l.b16 %v188
    %v228 = vunpack.c.l.b16 %v189
    %v229 = vunpack.c.l.b16 %v190
    %v230 = vunpack.c.l.b16 %v191
    %v231 = vunpack.c.l.b16 %v192
    %v232 = vunpack.c.l.b16 %v193
    %v233 = vunpack.c.l.b16 %v194
    %v234 = vpack.c.b16 %v219, %v218
    %v235 = vpack.c.b16 %v221, %v220
    %v236 = vpack.c.b16 %v223, %v222
    %v237 = vpack.c.b16 %v225, %v224
    %v238 = vpack.c.b16 %v227, %v226
    %v239 = vpack.c.b16 %v229, %v228
    %v240 = vpack.c.b16 %v231, %v230
    %v241 = vpack.c.b16 %v233, %v232
    %250 = vmatprep.subr.bf16.mxu0 0
    %251 = vmatpush1.bf16.msra.mxu0 %v234
    %252 = vmatprep.subr.bf16.mxu0 0
    %253 = vmatpush1.bf16.msra.mxu0 %v235
    %254 = vmatprep.subr.bf16.mxu0 0
    %255 = vmatpush1.bf16.msra.mxu0 %v236
    %256 = vmatprep.subr.bf16.mxu0 0
    %257 = vmatpush1.bf16.msra.mxu0 %v237
    %258 = vmatprep.subr.bf16.mxu0 0
    %259 = vmatpush1.bf16.msra.mxu0 %v238
    %260 = vmatprep.subr.bf16.mxu0 0
    %261 = vmatpush1.bf16.msra.mxu0 %v239
    %262 = vmatprep.subr.bf16.mxu0 0
    %263 = vmatpush1.bf16.msra.mxu0 %v240
    %264 = vmatprep.subr.bf16.mxu0 0
    %265 = vmatpush1.bf16.msra.mxu0 %v241
    %266 = vmatprep.subr.bf16.mxu0 0
    %267 = vmatpush1.bf16.msra.mxu0 0
    %268 = vmatprep.subr.bf16.mxu0 0
    %269 = vmatpush1.bf16.msra.mxu0 0
    %270 = vmatprep.subr.bf16.mxu0 0
    %271 = vmatpush1.bf16.msra.mxu0 0
    %272 = vmatprep.subr.bf16.mxu0 0
    %273 = vmatpush1.bf16.msra.mxu0 0
    %274 = vmatprep.subr.bf16.mxu0 0
    %275 = vmatpush1.bf16.msra.mxu0 0
    %276 = vmatprep.subr.bf16.mxu0 0
    %277 = vmatpush1.bf16.msra.mxu0 0
    %278 = vmatprep.subr.bf16.mxu0 0
    %279 = vmatpush1.bf16.msra.mxu0 0
    %280 = vmatprep.subr.bf16.mxu0 0
    %281 = vmatpush1.bf16.msra.mxu0 0
    %282 = vmatprep.mubr.bf16.mxu0 0
    %283 = vmatmul.mubr.bf16.gmra.mrb[0].mxu0 %v178
    %v284 = vpop.f32.mrb[0].mxu0
    %v285 = vadd.f32 %v200, %v284
    %v286 = vpop.f32.mrb[0].mxu0
    %v287 = vpop.f32.mrb[0].mxu0
    %v288 = vpop.f32.mrb[0].mxu0
    %289 = vdwg.mxu0
    %v290 = vmax.f32 %v285, 0.0
    %v291 = vpack.c.bf16 %v290, %v290
    %v292 = vld [vmem:[#allocation11] sm:$0xf]
    %v293 = vld [vmem:[#allocation11 + $0x4] sm:$0xf]
    %v294 = vld [vmem:[#allocation11 + $0x8] sm:$0xf]
    %v295 = vld [vmem:[#allocation11 + $0xc] sm:$0xf]
    %v296 = vld [vmem:[#allocation11 + $0x10] sm:$0xf]
    %v297 = vld [vmem:[#allocation11 + $0x14] sm:$0xf]
    %v298 = vld [vmem:[#allocation11 + $0x18] sm:$0xf]
    %v299 = vld [vmem:[#allocation11 + $0x1c] sm:$0xf]
    %v300 = vld [vmem:[#allocation11 + $0x20] sm:$0xf]
    %v301 = vld [vmem:[#allocation11 + $0x24] sm:$0xf]
    %v302 = vld [vmem:[#allocation11 + $0x28] sm:$0xf]
    %v303 = vld [vmem:[#allocation11 + $0x2c] sm:$0xf]
    %v304 = vld [vmem:[#allocation11 + $0x30] sm:$0xf]
    %v305 = vld [vmem:[#allocation11 + $0x34] sm:$0xf]
    %v306 = vld [vmem:[#allocation11 + $0x38] sm:$0xf]
    %v307 = vld [vmem:[#allocation11 + $0x3c] sm:$0xf]
    %v308 = vld [vmem:[%s7] sm:$0x1]
    %v310 = vlaneseq
    %v311 = vshrl.u32 %v310, 7
    %v312 = vsub.s32 0, %v311
    %v313 = vrot.slane %v308, %v312
    %v331 = vunpack.c.l.b16 %v292
    %v332 = vunpack.c.l.b16 %v293
    %v333 = vunpack.c.l.b16 %v294
    %v334 = vunpack.c.l.b16 %v295
    %v335 = vunpack.c.l.b16 %v296
    %v336 = vunpack.c.l.b16 %v297
    %v337 = vunpack.c.l.b16 %v298
    %v338 = vunpack.c.l.b16 %v299
    %v339 = vunpack.c.l.b16 %v300
    %v340 = vunpack.c.l.b16 %v301
    %v341 = vunpack.c.l.b16 %v302
    %v342 = vunpack.c.l.b16 %v303
    %v343 = vunpack.c.l.b16 %v304
    %v344 = vunpack.c.l.b16 %v305
    %v345 = vunpack.c.l.b16 %v306
    %v346 = vunpack.c.l.b16 %v307
    %v347 = vpack.c.b16 %v332, %v331
    %v348 = vpack.c.b16 %v334, %v333
    %v349 = vpack.c.b16 %v336, %v335
    %v350 = vpack.c.b16 %v338, %v337
    %v351 = vpack.c.b16 %v340, %v339
    %v352 = vpack.c.b16 %v342, %v341
    %v353 = vpack.c.b16 %v344, %v343
    %v354 = vpack.c.b16 %v346, %v345
    %363 = vmatprep.subr.bf16.mxu0 0
    %364 = vmatpush1.bf16.msra.mxu0 %v347
    %365 = vmatprep.subr.bf16.mxu0 0
    %366 = vmatpush1.bf16.msra.mxu0 %v348
    %367 = vmatprep.subr.bf16.mxu0 0
    %368 = vmatpush1.bf16.msra.mxu0 %v349
    %369 = vmatprep.subr.bf16.mxu0 0
    %370 = vmatpush1.bf16.msra.mxu0 %v350
    %371 = vmatprep.subr.bf16.mxu0 0
    %372 = vmatpush1.bf16.msra.mxu0 %v351
    %373 = vmatprep.subr.bf16.mxu0 0
    %374 = vmatpush1.bf16.msra.mxu0 %v352
    %375 = vmatprep.subr.bf16.mxu0 0
    %376 = vmatpush1.bf16.msra.mxu0 %v353
    %377 = vmatprep.subr.bf16.mxu0 0
    %378 = vmatpush1.bf16.msra.mxu0 %v354
    %379 = vmatprep.subr.bf16.mxu0 0
    %380 = vmatpush1.bf16.msra.mxu0 0
    %381 = vmatprep.subr.bf16.mxu0 0
    %382 = vmatpush1.bf16.msra.mxu0 0
    %383 = vmatprep.subr.bf16.mxu0 0
    %384 = vmatpush1.bf16.msra.mxu0 0
    %385 = vmatprep.subr.bf16.mxu0 0
    %386 = vmatpush1.bf16.msra.mxu0 0
    %387 = vmatprep.subr.bf16.mxu0 0
    %388 = vmatpush1.bf16.msra.mxu0 0
    %389 = vmatprep.subr.bf16.mxu0 0
    %390 = vmatpush1.bf16.msra.mxu0 0
    %391 = vmatprep.subr.bf16.mxu0 0
    %392 = vmatpush1.bf16.msra.mxu0 0
    %393 = vmatprep.subr.bf16.mxu0 0
    %394 = vmatpush1.bf16.msra.mxu0 0
    %395 = vmatprep.mubr.bf16.mxu0 0
    %396 = vmatmul.mubr.bf16.gmra.mrb[0].mxu0 %v291
    %v397 = vpop.f32.mrb[0].mxu0
    %v398 = vadd.f32 %v313, %v397
    %v399 = vpop.f32.mrb[0].mxu0
    %v400 = vpop.f32.mrb[0].mxu0
    %v401 = vpop.f32.mrb[0].mxu0
    %402 = vdwg.mxu0
    %v403 = vmax.f32 %v398, 0.0
    %405 = vset.pattern.permute.xlu0 0
    %406 = vperm.xlu0 %405, %v107
    %v407 = vpop.permute.xlu0 %406
    %v409 = vlaneseq
    %v410 = vshrl.u32 %v409, 7
    %v411 = vsub.s32 0, %v410
    %v412 = vrot.slane %v407, %v411
    %413 = vmatprep.subr.mxu0 0.0
    %414 = vmatpush1.xpose.msra.mxu0 %v403
    %415 = vmatprep.subr.mxu0 0.0
    %416 = vmatpush1.xpose.msra.mxu0 0.0
    %417 = vmatprep.subr.mxu0 0.0
    %418 = vmatpush1.xpose.msra.mxu0 0.0
    %419 = vmatprep.subr.mxu0 0.0
    %420 = vmatpush1.xpose.msra.mxu0 0.0
    %421 = vmatprep.subr.mxu0 0.0
    %422 = vmatpush1.xpose.msra.mxu0 0.0
    %423 = vmatprep.subr.mxu0 0.0
    %424 = vmatpush1.xpose.msra.mxu0 0.0
    %425 = vmatprep.subr.mxu0 0.0
    %426 = vmatpush1.xpose.msra.mxu0 0.0
    %427 = vmatprep.subr.mxu0 0.0
    %428 = vmatpush1.xpose.msra.mxu0 0.0
    %429 = vmatprep.subr.mxu0 0.0
    %430 = vmatpush1.xpose.msra.mxu0 0.0
    %431 = vmatprep.subr.mxu0 0.0
    %432 = vmatpush1.xpose.msra.mxu0 0.0
    %433 = vmatprep.subr.mxu0 0.0
    %434 = vmatpush1.xpose.msra.mxu0 0.0
    %435 = vmatprep.subr.mxu0 0.0
    %436 = vmatpush1.xpose.msra.mxu0 0.0
    %437 = vmatprep.subr.mxu0 0.0
    %438 = vmatpush1.xpose.msra.mxu0 0.0
    %439 = vmatprep.subr.mxu0 0.0
    %440 = vmatpush1.xpose.msra.mxu0 0.0
    %441 = vmatprep.subr.mxu0 0.0
    %442 = vmatpush1.xpose.msra.mxu0 0.0
    %443 = vmatprep.subr.mxu0 0.0
    %444 = vmatpush1.xpose.msra.mxu0 0.0
    %445 = vmatprep.subr.mxu0 0.0
    %446 = vmatpush1.xpose.msra.mxu0 0.0
    %447 = vmatprep.subr.mxu0 0.0
    %448 = vmatpush1.xpose.msra.mxu0 0.0
    %449 = vmatprep.subr.mxu0 0.0
    %450 = vmatpush1.xpose.msra.mxu0 0.0
    %451 = vmatprep.subr.mxu0 0.0
    %452 = vmatpush1.xpose.msra.mxu0 0.0
    %453 = vmatprep.subr.mxu0 0.0
    %454 = vmatpush1.xpose.msra.mxu0 0.0
    %455 = vmatprep.subr.mxu0 0.0
    %456 = vmatpush1.xpose.msra.mxu0 0.0
    %457 = vmatprep.subr.mxu0 0.0
    %458 = vmatpush1.xpose.msra.mxu0 0.0
    %459 = vmatprep.subr.mxu0 0.0
    %460 = vmatpush1.xpose.msra.mxu0 0.0
    %461 = vmatprep.subr.mxu0 0.0
    %462 = vmatpush1.xpose.msra.mxu0 0.0
    %463 = vmatprep.subr.mxu0 0.0
    %464 = vmatpush1.xpose.msra.mxu0 0.0
    %465 = vmatprep.subr.mxu0 0.0
    %466 = vmatpush1.xpose.msra.mxu0 0.0
    %467 = vmatprep.subr.mxu0 0.0
    %468 = vmatpush1.xpose.msra.mxu0 0.0
    %469 = vmatprep.subr.mxu0 0.0
    %470 = vmatpush1.xpose.msra.mxu0 0.0
    %471 = vmatprep.subr.mxu0 0.0
    %472 = vmatpush1.xpose.msra.mxu0 0.0
    %473 = vmatprep.subr.mxu0 0.0
    %474 = vmatpush1.xpose.msra.mxu0 0.0
    %475 = vmatprep.subr.mxu0 0.0
    %476 = vmatpush1.xpose.msra.mxu0 0.0
    %477 = vmatprep.mubr.f32.mxu0 0.0
    %478 = vmatmul.mubr.f32.gmra.mrb[0].mxu0 %v106
    %v479 = vpop.f32.mrb[0].mxu0
    %v480 = vadd.f32 %v412, %v479
    %v481 = vpop.f32.mrb[0].mxu0
    %482 = vdwg.mxu0
    %v483 = vand.u32 2147483647, %v480
    %v484 = vsub.f32 0.0, %v483
    %v485 = vmul.f32 %v484, 1.442695
    %v486 = vpow.pop %v485
    %vm487 = vcmp.ge.f32.partialorder %v480, 0.0
    %v488 = vadd.f32 %v486, 1.0
    %v489 = vrcp.pop %v488
    %v490 = vmul.f32 1.0, %v489
    %v491 = vmul.f32 %v486, %v489
    %v492 = vsel %vm487, %v490, %v491
    %vm493 = vcmask 57344
    %494 = vst.msk [vmem:[#allocation12] sm:$0x1] %vm493, %v492
    %v495 = vld [vmem:[#allocation6] sm:$0xff]
    %v496 = vpack.c.bf16 %v495, %v495
    %v497 = vld [vmem:[#allocation8] sm:$0xf]
    %v498 = vld [vmem:[#allocation8 + $0x4] sm:$0xf]
    %v499 = vld [vmem:[#allocation8 + $0x8] sm:$0xf]
    %v500 = vld [vmem:[#allocation8 + $0xc] sm:$0xf]
    %v501 = vld [vmem:[%s3] sm:$0x1]
    %v503 = vlaneseq
    %v504 = vshrl.u32 %v503, 7
    %v505 = vsub.s32 0, %v504
    %v506 = vrot.slane %v501, %v505
    %v512 = vunpack.c.l.b16 %v497
    %v513 = vunpack.c.l.b16 %v498
    %v514 = vunpack.c.l.b16 %v499
    %v515 = vunpack.c.l.b16 %v500
    %v516 = vpack.c.b16 %v513, %v512
    %v517 = vpack.c.b16 %v515, %v514
    %v521 = vsel %vm133, %v496, 0
    %523 = vmatprep.subr.bf16.mxu0 0
    %524 = vmatpush1.bf16.msra.mxu0 %v516
    %525 = vmatprep.subr.bf16.mxu0 0
    %526 = vmatpush1.bf16.msra.mxu0 %v517
    %527 = vmatprep.subr.bf16.mxu0 0
    %528 = vmatpush1.bf16.msra.mxu0 0
    %529 = vmatprep.subr.bf16.mxu0 0
    %530 = vmatpush1.bf16.msra.mxu0 0
    %531 = vmatprep.subr.bf16.mxu0 0
    %532 = vmatpush1.bf16.msra.mxu0 0
    %533 = vmatprep.subr.bf16.mxu0 0
    %534 = vmatpush1.bf16.msra.mxu0 0
    %535 = vmatprep.subr.bf16.mxu0 0
    %536 = vmatpush1.bf16.msra.mxu0 0
    %537 = vmatprep.subr.bf16.mxu0 0
    %538 = vmatpush1.bf16.msra.mxu0 0
    %539 = vmatprep.subr.bf16.mxu0 0
    %540 = vmatpush1.bf16.msra.mxu0 0
    %541 = vmatprep.subr.bf16.mxu0 0
    %542 = vmatpush1.bf16.msra.mxu0 0
    %543 = vmatprep.subr.bf16.mxu0 0
    %544 = vmatpush1.bf16.msra.mxu0 0
    %545 = vmatprep.subr.bf16.mxu0 0
    %546 = vmatpush1.bf16.msra.mxu0 0
    %547 = vmatprep.subr.bf16.mxu0 0
    %548 = vmatpush1.bf16.msra.mxu0 0
    %549 = vmatprep.subr.bf16.mxu0 0
    %550 = vmatpush1.bf16.msra.mxu0 0
    %551 = vmatprep.subr.bf16.mxu0 0
    %552 = vmatpush1.bf16.msra.mxu0 0
    %553 = vmatprep.subr.bf16.mxu0 0
    %554 = vmatpush1.bf16.msra.mxu0 0
    %555 = vmatprep.mubr.bf16.mxu0 0
    %556 = vmatmul.mubr.bf16.gmra.mrb[0].mxu0 %v521
    %v557 = vpop.f32.mrb[0].mxu0
    %v558 = vadd.f32 %v506, %v557
    %v559 = vpop.f32.mrb[0].mxu0
    %v560 = vpop.f32.mrb[0].mxu0
    %v561 = vpop.f32.mrb[0].mxu0
    %562 = vdwg.mxu0
    %v563 = vmax.f32 %v558, 0.0
    %v564 = vpack.c.bf16 %v563, %v563
    %v565 = vld [vmem:[#allocation9] sm:$0xf]
    %v566 = vld [vmem:[#allocation9 + $0x4] sm:$0xf]
    %v567 = vld [vmem:[#allocation9 + $0x8] sm:$0xf]
    %v568 = vld [vmem:[#allocation9 + $0xc] sm:$0xf]
    %v569 = vld [vmem:[#allocation9 + $0x10] sm:$0xf]
    %v570 = vld [vmem:[#allocation9 + $0x14] sm:$0xf]
    %v571 = vld [vmem:[#allocation9 + $0x18] sm:$0xf]
    %v572 = vld [vmem:[#allocation9 + $0x1c] sm:$0xf]
    %v573 = vld [vmem:[#allocation9 + $0x20] sm:$0xf]
    %v574 = vld [vmem:[#allocation9 + $0x24] sm:$0xf]
    %v575 = vld [vmem:[#allocation9 + $0x28] sm:$0xf]
    %v576 = vld [vmem:[#allocation9 + $0x2c] sm:$0xf]
    %v577 = vld [vmem:[#allocation9 + $0x30] sm:$0xf]
    %v578 = vld [vmem:[#allocation9 + $0x34] sm:$0xf]
    %v579 = vld [vmem:[#allocation9 + $0x38] sm:$0xf]
    %v580 = vld [vmem:[#allocation9 + $0x3c] sm:$0xf]
    %v581 = vld [vmem:[%s5] sm:$0x1]
    %v583 = vlaneseq
    %v584 = vshrl.u32 %v583, 7
    %v585 = vsub.s32 0, %v584
    %v586 = vrot.slane %v581, %v585
    %v604 = vunpack.c.l.b16 %v565
    %v605 = vunpack.c.l.b16 %v566
    %v606 = vunpack.c.l.b16 %v567
    %v607 = vunpack.c.l.b16 %v568
    %v608 = vunpack.c.l.b16 %v569
    %v609 = vunpack.c.l.b16 %v570
    %v610 = vunpack.c.l.b16 %v571
    %v611 = vunpack.c.l.b16 %v572
    %v612 = vunpack.c.l.b16 %v573
    %v613 = vunpack.c.l.b16 %v574
    %v614 = vunpack.c.l.b16 %v575
    %v615 = vunpack.c.l.b16 %v576
    %v616 = vunpack.c.l.b16 %v577
    %v617 = vunpack.c.l.b16 %v578
    %v618 = vunpack.c.l.b16 %v579
    %v619 = vunpack.c.l.b16 %v580
    %v620 = vpack.c.b16 %v605, %v604
    %v621 = vpack.c.b16 %v607, %v606
    %v622 = vpack.c.b16 %v609, %v608
    %v623 = vpack.c.b16 %v611, %v610
    %v624 = vpack.c.b16 %v613, %v612
    %v625 = vpack.c.b16 %v615, %v614
    %v626 = vpack.c.b16 %v617, %v616
    %v627 = vpack.c.b16 %v619, %v618
    %636 = vmatprep.subr.bf16.mxu0 0
    %637 = vmatpush1.bf16.msra.mxu0 %v620
    %638 = vmatprep.subr.bf16.mxu0 0
    %639 = vmatpush1.bf16.msra.mxu0 %v621
    %640 = vmatprep.subr.bf16.mxu0 0
    %641 = vmatpush1.bf16.msra.mxu0 %v622
    %642 = vmatprep.subr.bf16.mxu0 0
    %643 = vmatpush1.bf16.msra.mxu0 %v623
    %644 = vmatprep.subr.bf16.mxu0 0
    %645 = vmatpush1.bf16.msra.mxu0 %v624
    %646 = vmatprep.subr.bf16.mxu0 0
    %647 = vmatpush1.bf16.msra.mxu0 %v625
    %648 = vmatprep.subr.bf16.mxu0 0
    %649 = vmatpush1.bf16.msra.mxu0 %v626
    %650 = vmatprep.subr.bf16.mxu0 0
    %651 = vmatpush1.bf16.msra.mxu0 %v627
    %652 = vmatprep.subr.bf16.mxu0 0
    %653 = vmatpush1.bf16.msra.mxu0 0
    %654 = vmatprep.subr.bf16.mxu0 0
    %655 = vmatpush1.bf16.msra.mxu0 0
    %656 = vmatprep.subr.bf16.mxu0 0
    %657 = vmatpush1.bf16.msra.mxu0 0
    %658 = vmatprep.subr.bf16.mxu0 0
    %659 = vmatpush1.bf16.msra.mxu0 0
    %660 = vmatprep.subr.bf16.mxu0 0
    %661 = vmatpush1.bf16.msra.mxu0 0
    %662 = vmatprep.subr.bf16.mxu0 0
    %663 = vmatpush1.bf16.msra.mxu0 0
    %664 = vmatprep.subr.bf16.mxu0 0
    %665 = vmatpush1.bf16.msra.mxu0 0
    %666 = vmatprep.subr.bf16.mxu0 0
    %667 = vmatpush1.bf16.msra.mxu0 0
    %668 = vmatprep.mubr.bf16.mxu0 0
    %669 = vmatmul.mubr.bf16.gmra.mrb[0].mxu0 %v564
    %v670 = vpop.f32.mrb[0].mxu0
    %v671 = vadd.f32 %v586, %v670
    %v672 = vpop.f32.mrb[0].mxu0
    %v673 = vpop.f32.mrb[0].mxu0
    %v674 = vpop.f32.mrb[0].mxu0
    %675 = vdwg.mxu0
    %v676 = vmax.f32 %v671, 0.0
    %v677 = vpack.c.bf16 %v676, %v676
    %v678 = vld [vmem:[#allocation11] sm:$0xf]
    %v679 = vld [vmem:[#allocation11 + $0x4] sm:$0xf]
    %v680 = vld [vmem:[#allocation11 + $0x8] sm:$0xf]
    %v681 = vld [vmem:[#allocation11 + $0xc] sm:$0xf]
    %v682 = vld [vmem:[#allocation11 + $0x10] sm:$0xf]
    %v683 = vld [vmem:[#allocation11 + $0x14] sm:$0xf]
    %v684 = vld [vmem:[#allocation11 + $0x18] sm:$0xf]
    %v685 = vld [vmem:[#allocation11 + $0x1c] sm:$0xf]
    %v686 = vld [vmem:[#allocation11 + $0x20] sm:$0xf]
    %v687 = vld [vmem:[#allocation11 + $0x24] sm:$0xf]
    %v688 = vld [vmem:[#allocation11 + $0x28] sm:$0xf]
    %v689 = vld [vmem:[#allocation11 + $0x2c] sm:$0xf]
    %v690 = vld [vmem:[#allocation11 + $0x30] sm:$0xf]
    %v691 = vld [vmem:[#allocation11 + $0x34] sm:$0xf]
    %v692 = vld [vmem:[#allocation11 + $0x38] sm:$0xf]
    %v693 = vld [vmem:[#allocation11 + $0x3c] sm:$0xf]
    %v694 = vld [vmem:[%s7] sm:$0x1]
    %v696 = vlaneseq
    %v697 = vshrl.u32 %v696, 7
    %v698 = vsub.s32 0, %v697
    %v699 = vrot.slane %v694, %v698
    %v717 = vunpack.c.l.b16 %v678
    %v718 = vunpack.c.l.b16 %v679
    %v719 = vunpack.c.l.b16 %v680
    %v720 = vunpack.c.l.b16 %v681
    %v721 = vunpack.c.l.b16 %v682
    %v722 = vunpack.c.l.b16 %v683
    %v723 = vunpack.c.l.b16 %v684
    %v724 = vunpack.c.l.b16 %v685
    %v725 = vunpack.c.l.b16 %v686
    %v726 = vunpack.c.l.b16 %v687
    %v727 = vunpack.c.l.b16 %v688
    %v728 = vunpack.c.l.b16 %v689
    %v729 = vunpack.c.l.b16 %v690
    %v730 = vunpack.c.l.b16 %v691
    %v731 = vunpack.c.l.b16 %v692
    %v732 = vunpack.c.l.b16 %v693
    %v733 = vpack.c.b16 %v718, %v717
    %v734 = vpack.c.b16 %v720, %v719
    %v735 = vpack.c.b16 %v722, %v721
    %v736 = vpack.c.b16 %v724, %v723
    %v737 = vpack.c.b16 %v726, %v725
    %v738 = vpack.c.b16 %v728, %v727
    %v739 = vpack.c.b16 %v730, %v729
    %v740 = vpack.c.b16 %v732, %v731
    %749 = vmatprep.subr.bf16.mxu0 0
    %750 = vmatpush1.bf16.msra.mxu0 %v733
    %751 = vmatprep.subr.bf16.mxu0 0
    %752 = vmatpush1.bf16.msra.mxu0 %v734
    %753 = vmatprep.subr.bf16.mxu0 0
    %754 = vmatpush1.bf16.msra.mxu0 %v735
    %755 = vmatprep.subr.bf16.mxu0 0
    %756 = vmatpush1.bf16.msra.mxu0 %v736
    %757 = vmatprep.subr.bf16.mxu0 0
    %758 = vmatpush1.bf16.msra.mxu0 %v737
    %759 = vmatprep.subr.bf16.mxu0 0
    %760 = vmatpush1.bf16.msra.mxu0 %v738
    %761 = vmatprep.subr.bf16.mxu0 0
    %762 = vmatpush1.bf16.msra.mxu0 %v739
    %763 = vmatprep.subr.bf16.mxu0 0
    %764 = vmatpush1.bf16.msra.mxu0 %v740
    %765 = vmatprep.subr.bf16.mxu0 0
    %766 = vmatpush1.bf16.msra.mxu0 0
    %767 = vmatprep.subr.bf16.mxu0 0
    %768 = vmatpush1.bf16.msra.mxu0 0
    %769 = vmatprep.subr.bf16.mxu0 0
    %770 = vmatpush1.bf16.msra.mxu0 0
    %771 = vmatprep.subr.bf16.mxu0 0
    %772 = vmatpush1.bf16.msra.mxu0 0
    %773 = vmatprep.subr.bf16.mxu0 0
    %774 = vmatpush1.bf16.msra.mxu0 0
    %775 = vmatprep.subr.bf16.mxu0 0
    %776 = vmatpush1.bf16.msra.mxu0 0
    %777 = vmatprep.subr.bf16.mxu0 0
    %778 = vmatpush1.bf16.msra.mxu0 0
    %779 = vmatprep.subr.bf16.mxu0 0
    %780 = vmatpush1.bf16.msra.mxu0 0
    %781 = vmatprep.mubr.bf16.mxu0 0
    %782 = vmatmul.mubr.bf16.gmra.mrb[0].mxu0 %v677
    %v783 = vpop.f32.mrb[0].mxu0
    %v784 = vadd.f32 %v699, %v783
    %v785 = vpop.f32.mrb[0].mxu0
    %v786 = vpop.f32.mrb[0].mxu0
    %v787 = vpop.f32.mrb[0].mxu0
    %788 = vdwg.mxu0
    %v789 = vmax.f32 %v784, 0.0
    %790 = vmatprep.subr.mxu0 0.0
    %791 = vmatpush1.xpose.msra.mxu0 %v789
    %792 = vmatprep.subr.mxu0 0.0
    %793 = vmatpush1.xpose.msra.mxu0 0.0
    %794 = vmatprep.subr.mxu0 0.0
    %795 = vmatpush1.xpose.msra.mxu0 0.0
    %796 = vmatprep.subr.mxu0 0.0
    %797 = vmatpush1.xpose.msra.mxu0 0.0
    %798 = vmatprep.subr.mxu0 0.0
    %799 = vmatpush1.xpose.msra.mxu0 0.0
    %800 = vmatprep.subr.mxu0 0.0
    %801 = vmatpush1.xpose.msra.mxu0 0.0
    %802 = vmatprep.subr.mxu0 0.0
    %803 = vmatpush1.xpose.msra.mxu0 0.0
    %804 = vmatprep.subr.mxu0 0.0
    %805 = vmatpush1.xpose.msra.mxu0 0.0
    %806 = vmatprep.subr.mxu0 0.0
    %807 = vmatpush1.xpose.msra.mxu0 0.0
    %808 = vmatprep.subr.mxu0 0.0
    %809 = vmatpush1.xpose.msra.mxu0 0.0
    %810 = vmatprep.subr.mxu0 0.0
    %811 = vmatpush1.xpose.msra.mxu0 0.0
    %812 = vmatprep.subr.mxu0 0.0
    %813 = vmatpush1.xpose.msra.mxu0 0.0
    %814 = vmatprep.subr.mxu0 0.0
    %815 = vmatpush1.xpose.msra.mxu0 0.0
    %816 = vmatprep.subr.mxu0 0.0
    %817 = vmatpush1.xpose.msra.mxu0 0.0
    %818 = vmatprep.subr.mxu0 0.0
    %819 = vmatpush1.xpose.msra.mxu0 0.0
    %820 = vmatprep.subr.mxu0 0.0
    %821 = vmatpush1.xpose.msra.mxu0 0.0
    %822 = vmatprep.subr.mxu0 0.0
    %823 = vmatpush1.xpose.msra.mxu0 0.0
    %824 = vmatprep.subr.mxu0 0.0
    %825 = vmatpush1.xpose.msra.mxu0 0.0
    %826 = vmatprep.subr.mxu0 0.0
    %827 = vmatpush1.xpose.msra.mxu0 0.0
    %828 = vmatprep.subr.mxu0 0.0
    %829 = vmatpush1.xpose.msra.mxu0 0.0
    %830 = vmatprep.subr.mxu0 0.0
    %831 = vmatpush1.xpose.msra.mxu0 0.0
    %832 = vmatprep.subr.mxu0 0.0
    %833 = vmatpush1.xpose.msra.mxu0 0.0
    %834 = vmatprep.subr.mxu0 0.0
    %835 = vmatpush1.xpose.msra.mxu0 0.0
    %836 = vmatprep.subr.mxu0 0.0
    %837 = vmatpush1.xpose.msra.mxu0 0.0
    %838 = vmatprep.subr.mxu0 0.0
    %839 = vmatpush1.xpose.msra.mxu0 0.0
    %840 = vmatprep.subr.mxu0 0.0
    %841 = vmatpush1.xpose.msra.mxu0 0.0
    %842 = vmatprep.subr.mxu0 0.0
    %843 = vmatpush1.xpose.msra.mxu0 0.0
    %844 = vmatprep.subr.mxu0 0.0
    %845 = vmatpush1.xpose.msra.mxu0 0.0
    %846 = vmatprep.subr.mxu0 0.0
    %847 = vmatpush1.xpose.msra.mxu0 0.0
    %848 = vmatprep.subr.mxu0 0.0
    %849 = vmatpush1.xpose.msra.mxu0 0.0
    %850 = vmatprep.subr.mxu0 0.0
    %851 = vmatpush1.xpose.msra.mxu0 0.0
    %852 = vmatprep.subr.mxu0 0.0
    %853 = vmatpush1.xpose.msra.mxu0 0.0
    %854 = vmatprep.mubr.f32.mxu0 0.0
    %855 = vmatmul.mubr.f32.gmra.mrb[0].mxu0 %v106
    %v856 = vpop.f32.mrb[0].mxu0
    %v857 = vadd.f32 %v412, %v856
    %v858 = vpop.f32.mrb[0].mxu0
    %859 = vdwg.mxu0
    %v860 = vand.u32 2147483647, %v857
    %v861 = vsub.f32 0.0, %v860
    %v862 = vmul.f32 %v861, 1.442695
    %v863 = vpow.pop %v862
    %vm864 = vcmp.ge.f32.partialorder %v857, 0.0
    %v865 = vadd.f32 %v863, 1.0
    %v866 = vrcp.pop %v865
    %v867 = vmul.f32 1.0, %v866
    %v868 = vmul.f32 %v863, %v866
    %v869 = vsel %vm864, %v867, %v868
    %870 = vst.msk [vmem:[#allocation13] sm:$0x1] %vm493, %v869
    // Predicated region
    $region62: #{tpu_custom_call.1} parent=1 // pred_check
      _
    $region63: #{tpu_custom_call.1} parent=1 // pred_check_branch
      %872 = sbr.rel (0) target = $region65
    $region64: #{tpu_custom_call.1} parent=1 // pred_region
      %s874 = ssub.s32 16, 16
      %875 = vsyncadd [#allocation5], %s874
      %s877 = sshll.u32 [#allocation12], 4
      %s878 = int_to_ptr.vmem [resolvable:$true] %s877
      %880 = dma.vmem_to_hbm [thread:$0]  %s878, 16, %s10, [#allocation5]
    $region65: #{tpu_custom_call.1} parent=1 // pred_fallthru
      _
    // Predicated region
    $region66: #{tpu_custom_call.1} parent=1 // pred_check
      _
    $region67: #{tpu_custom_call.1} parent=1 // pred_check_branch
      %882 = sbr.rel (0) target = $region69
    $region68: #{tpu_custom_call.1} parent=1 // pred_region
      %s884 = ssub.s32 16, 16
      %885 = vsyncadd [#allocation14], %s884
      %s887 = sshll.u32 [#allocation13], 4
      %s888 = int_to_ptr.vmem [resolvable:$true] %s887
      %890 = dma.vmem_to_hbm [thread:$0]  %s888, 16, %s11, [#allocation14]
    $region69: #{tpu_custom_call.1} parent=1 // pred_fallthru
      _
    // Predicated region
    $region70: #{tpu_custom_call.1} parent=1 // pred_check
      _
    $region71: #{tpu_custom_call.1} parent=1 // pred_check_branch
      %892 = sbr.rel (0) target = $region73
    $region72: #{tpu_custom_call.1} parent=1 // pred_region
      %893 = dma.done [#allocation5], 16
    $region73: #{tpu_custom_call.1} parent=1 // pred_fallthru
      _
    // Predicated region
    $region74: #{tpu_custom_call.1} parent=1 // pred_check
      _
    $region75: #{tpu_custom_call.1} parent=1 // pred_check_branch
      %895 = sbr.rel (0) target = $region77
    $region76: #{tpu_custom_call.1} parent=1 // pred_region
      %896 = dma.done [#allocation14], 16
    $region77: #{tpu_custom_call.1} parent=1 // pred_fallthru
      _
    %897 = vsyncpa [#allocation4], 1
    %898 = vsyncpa [#allocation7], 1
    %899 = vsyncpa [#allocation10], 1
    %900 = vsyncpa [#allocation5], 1
    %901 = vsyncpa [#allocation14], 1

</llo_original>
